<compile_context>
chip_gen: v7x
topology: tpu7x:2x2x1
jax: 0.10.0
libtpu: 0.0.40
codegen_flags: <defaults>
</compile_context>

<pallas_src>
import math

import jax
import jax.numpy as jnp
from jax import lax
from jax.experimental import pallas as pl
from jax.experimental.pallas import tpu as pltpu

config = dict(noise=4, cnndim=8, batch=8)
KS = 5                        # Extractor conv kernel size
OUTPUT_DIM = 16
NOISE_DIM = config['noise']
CNN_DIM = config['cnndim']
BATCH = config['batch']
PAD = KS // 2 + 1             # Conv1d padding

# ------------------------- packed-parameter layout -------------------------- #
# Slab A: f32, shape (64, 4*C) = (64, 32); every sub-block starts on a
# multiple-of-8 row so in-kernel ref slices stay tile-friendly.
_A_ROWS = 64
_A_WCONV = 0        # rows  0:20, lanes 0:C    conv weight, row k*N+n == W_t[:, n, k]
_A_MISC = 24        # rows 24:30               [wih0, bl0, bl1, b2, b3, std_weight]
_A_WHH0 = 32        # rows 32:40               LSTM layer-0 recurrent weight
_A_WIH1 = 40        # rows 40:48               LSTM layer-1 input weight
_A_WHH1 = 48        # rows 48:56               LSTM layer-1 recurrent weight
_A_W3 = 56          # rows 56:64, lanes 0:O    Linear(batch, output_dim) weight

# Slab B: bf16, shape (24, 512) — first Linear of the MLP head.
_B_ROWS = 24
_B_W1X = 0          # rows  0:4   x-rows of Linear(noise+C, 512)
_B_W1Y = 8          # rows  8:16  y-rows (applied once; y is repeated over batch)
_B_B1 = 16          # row  16     bias


# ------------------------------ fused kernel ------------------------------- #

def _generator_kernel(x_ref, eps_ref, a_ref, b_ref, w2_ref, out_ref, xp_ref):
    f32 = jnp.float32
    bf16 = jnp.bfloat16
    B, N = x_ref.shape                    # (batch, noise_dim) = (8, 4)
    C = CNN_DIM                           # latent dim / LSTM hidden = 8
    ks = KS                               # 5
    pad = PAD                             # 3
    L = B + 2 * pad - ks + 1              # conv output length = 10
    O = eps_ref.shape[1]                  # output_dim = 16

    x = x_ref[...]                        # (B, N) f32

    # ---- First-Linear x-projection, hoisted to the very top so this MXU work
    #      issues underneath the long serial conv/LSTM chain. bf16 inputs,
    #      f32 accumulation. ----
    w1x = b_ref[_B_W1X:_B_W1X + N, :]                                    # (N, 512) bf16
    hx = jnp.dot(x.astype(bf16), w1x, preferred_element_type=f32)        # (B, 512) f32

    # --------- Conv1d(noise -> C, ks, padding=ks//2+1, bias=False) ----------
    # Transposed layout (length on sublanes, channels on lanes) so the PyTorch
    # unsqueeze/permute is free.  The conv itself runs on the MXU as five tiny
    # (L,N)x(N,4C) dots, tree-summed.
    xp_ref[...] = jnp.zeros((B + 2 * pad, N), f32)
    xp_ref[pad:pad + B, :] = x
    xp = xp_ref[...]                      # (B + 2*pad, N) = (14, 4)
    # TODO(synk): xp still makes one tiny VMEM scratch round trip; building it
    # purely in vregs needs an unaligned sublane pad/concat that we avoid for
    # lowering robustness.

    wcv = a_ref[_A_WCONV:_A_WCONV + 24, :]        # (24, 32); rows 20:24 & lanes C:4C zero
    parts = [
        jnp.dot(xp[k:k + L, :], wcv[k * N:(k + 1) * N, :],
                preferred_element_type=f32)
        for k in range(ks)
    ]                                              # 5 x (L, 4C)
    conv = (parts[0] + parts[1]) + (parts[2] + parts[3]) + parts[4]
    acc = conv[:, :C]                              # (L, C); lanes C:4C were zero weight

    # ---- BatchNorm1d(track_running_stats=False): per-channel batch stats,
    #      weight=1, bias=0, biased variance, eps=1e-5 ----
    mean = jnp.mean(acc, axis=0, keepdims=True)
    var = jnp.mean((acc - mean) ** 2, axis=0, keepdims=True)
    xn = (acc - mean) * lax.rsqrt(var + 1e-5)

    # ---- Mish: x * tanh(softplus(x)), softplus threshold = 20 ----
    sp = jnp.where(xn > 20.0, xn, jnp.log1p(jnp.exp(jnp.minimum(xn, 20.0))))
    act = xn * jnp.tanh(sp)

    # ---- AvgPool1d(kernel=B, stride=B, padding=1, count_include_pad):
    #      exactly one output window = (left zero pad + act[0:B-1]) / B ----
    g_row = jnp.sum(act[:B - 1, :], axis=0, keepdims=True) * (1.0 / B)   # (1, C)

    # --------------- 2-layer LSTM over C timesteps (MXU-free) ---------------
    misc = a_ref[_A_MISC:_A_MISC + 8, :]   # (8, 4C)
    wih0 = misc[0:1, :]                    # (1, 4C)
    bl0 = misc[1:2, :]                     # (1, 4C)  (= b_ih + b_hh, layer 0)
    bl1 = misc[2:3, :]                     # (1, 4C)  (layer 1)
    b2 = misc[3:4, :B]                     # (1, B)
    b3 = misc[4:5, :O]                     # (1, O)
    stdw = misc[5:6, :O]                   # (1, O)   std_weight
    whh0 = a_ref[_A_WHH0:_A_WHH0 + C, :]   # (C, 4C)
    wih1 = a_ref[_A_WIH1:_A_WIH1 + C, :]   # (C, 4C)
    whh1 = a_ref[_A_WHH1:_A_WHH1 + C, :]   # (C, 4C)

    # Diagonal mask flips a (1, C) row into a (C, 1) column with a VPU mask
    # multiply + XLU lane reduce (no MXU, no transpose relayout).
    rr = lax.broadcasted_iota(jnp.int32, (C, C), 0)
    cc = lax.broadcasted_iota(jnp.int32, (C, C), 1)
    eye_c = (rr == cc).astype(f32)

    def to_col(row):                       # (1, C) -> (C, 1)
        return jnp.sum(row * eye_c, axis=1, keepdims=True)

    # Hoisted (state independent) layer-0 input projection: g[t] * W_ih0 + b.
    gates0_all = to_col(g_row) * wih0 + bl0                    # (C, 4C)

    def cell(gates, c_prev):
        # one sigmoid + one tanh over the whole (1, 4C) gate row (2 EUP passes)
        sig = jax.nn.sigmoid(gates)
        tnh = jnp.tanh(gates)
        i = sig[:, 0 * C:1 * C]            # PyTorch gate order: i, f, g, o
        f = sig[:, 1 * C:2 * C]
        o = sig[:, 3 * C:4 * C]
        gg = tnh[:, 2 * C:3 * C]
        c_new = f * c_prev + i * gg
        return o * jnp.tanh(c_new), c_new

    h0 = jnp.zeros((1, C), f32)
    c0 = jnp.zeros((1, C), f32)
    h1 = jnp.zeros((1, C), f32)
    c1 = jnp.zeros((1, C), f32)

    for t in range(C):                     # static unroll, C == 8 timesteps
        # layer 0 recurrence: VPU broadcast-mul + XLU sublane reduce
        rec0 = jnp.sum(to_col(h0) * whh0, axis=0, keepdims=True)            # (1,4C)
        h0, c0 = cell(gates0_all[t:t + 1, :] + rec0, c0)
        # layer 1: input projection (new h0) + recurrence (h1), one reduce
        rec1 = jnp.sum(to_col(h0) * wih1 + to_col(h1) * whh1,
                       axis=0, keepdims=True)                               # (1,4C)
        h1, c1 = cell(rec1 + bl1, c1)

    # ------------------------------ MLP head --------------------------------
    # Linear(noise+C, 512) split: x rows were done on the MXU above (hx);
    # y rows (identical across the batch due to y.repeat(batch, 1)) are
    # computed once as a (1, 512) row on VPU/XLU and broadcast-added.
    w1y = b_ref[_B_W1Y:_B_W1Y + C, :]                                      # (C, 512) bf16
    b1 = b_ref[_B_B1:_B_B1 + 1, :]                                         # (1, 512) bf16
    yproj = jnp.sum(to_col(h1) * w1y.astype(f32), axis=0, keepdims=True)   # (1, 512)
    h = jnp.tanh(hx + yproj + b1.astype(f32))                              # (B, 512)

    h2 = jnp.tanh(jnp.dot(h.astype(bf16), w2_ref[...],
                          preferred_element_type=f32) + b2)                # (B, B)
    w3 = a_ref[_A_W3:_A_W3 + B, :]                                         # (B, 4C) f32
    mu = jnp.dot(h2, w3[:, :O], preferred_element_type=f32) + b3           # (B, O)

    # lane-dense (B, 2*O) output slab: [mu | mu + std_weight * eps]
    out_ref[:, :O] = mu
    out_ref[:, O:] = mu + stdw * eps_ref[...]


# ------------------------------ params / glue ------------------------------- #

def init_params(key, noise_dim=NOISE_DIM, output_dim=OUTPUT_DIM):
    C = CNN_DIM
    B = BATCH
    ks = KS
    f32 = jnp.float32
    bf16 = jnp.bfloat16
    keys = jax.random.split(key, 13)

    def xavier_t(k, fan_in, fan_out, shape=None, gain=5.0 / 3.0):
        bound = gain * math.sqrt(6.0 / (fan_in + fan_out))
        shape = (fan_in, fan_out) if shape is None else shape
        # sampled directly in (in, out) layout == transpose of PyTorch (out, in)
        return jax.random.uniform(k, shape, f32, -bound, bound)

    stdv = 1.0 / math.sqrt(C)

    def lstm_u(k, shape):
        return jax.random.uniform(k, shape, f32, -stdv, stdv)

    # --- raw parameters (same semantics as the PyTorch init) ---
    # Conv1d weight ~ N(0, 0.01); stored (ks*noise, C) with
    #   wconv[k*noise + n, c] == W_torch[c, n, k]
    wconv = 0.01 * jax.random.normal(keys[0], (ks * noise_dim, C), f32)
    wih0 = lstm_u(keys[1], (1, 4 * C))          # LSTM l0 (input_size=1), transposed
    whh0 = lstm_u(keys[2], (C, 4 * C))
    bl0 = lstm_u(keys[3], (1, 4 * C)) + lstm_u(keys[4], (1, 4 * C))
    wih1 = lstm_u(keys[5], (C, 4 * C))          # LSTM l1 (input_size=C)
    whh1 = lstm_u(keys[6], (C, 4 * C))
    bl1 = lstm_u(keys[7], (1, 4 * C)) + lstm_u(keys[8], (1, 4 * C))
    # Linear(noise+C, 512): xavier_uniform(gain=5/3) with the FULL layer's
    # fan-in/out, split into x rows and (repeated) y rows.  Biases zero (as in
    # the PyTorch init_weights).
    w1x = xavier_t(keys[9], noise_dim + C, 512, shape=(noise_dim, 512))
    w1y = xavier_t(keys[10], noise_dim + C, 512, shape=(C, 512))
    b1 = jnp.zeros((512,), f32)
    w2 = xavier_t(keys[11], 512, B)
    b2 = jnp.zeros((B,), f32)
    w3 = xavier_t(keys[12], B, output_dim)
    b3 = jnp.zeros((output_dim,), f32)
    std_w = jnp.zeros((output_dim,), f32)       # nn.Parameter(torch.zeros(output_dim))

    # --- pack slab A (all small f32 params, sublane-aligned sub-blocks) ---
    slab_a = jnp.zeros((_A_ROWS, 4 * C), f32)
    slab_a = slab_a.at[_A_WCONV:_A_WCONV + ks * noise_dim, :C].set(wconv)
    slab_a = slab_a.at[_A_MISC + 0, :].set(wih0[0])
    slab_a = slab_a.at[_A_MISC + 1, :].set(bl0[0])
    slab_a = slab_a.at[_A_MISC + 2, :].set(bl1[0])
    slab_a = slab_a.at[_A_MISC + 3, :B].set(b2)
    slab_a = slab_a.at[_A_MISC + 4, :output_dim].set(b3)
    slab_a = slab_a.at[_A_MISC + 5, :output_dim].set(std_w)
    slab_a = slab_a.at[_A_WHH0:_A_WHH0 + C, :].set(whh0)
    slab_a = slab_a.at[_A_WIH1:_A_WIH1 + C, :].set(wih1)
    slab_a = slab_a.at[_A_WHH1:_A_WHH1 + C, :].set(whh1)
    slab_a = slab_a.at[_A_W3:_A_W3 + B, :output_dim].set(w3)

    # --- pack slab B (first Linear, bf16 MXU-native weights) ---
    slab_b = jnp.zeros((_B_ROWS, 512), bf16)
    slab_b = slab_b.at[_B_W1X:_B_W1X + noise_dim, :].set(w1x.astype(bf16))
    slab_b = slab_b.at[_B_W1Y:_B_W1Y + C, :].set(w1y.astype(bf16))
    slab_b = slab_b.at[_B_B1, :].set(b1.astype(bf16))

    return {'slab_a': slab_a, 'slab_b': slab_b, 'w2': w2.astype(bf16)}


def generator_forward(params, x, eps):
    B, N = x.shape
    O = OUTPUT_DIM

    # The in-kernel AvgPool uses a single-window closed form; assert it holds.
    L = B + 2 * PAD - KS + 1
    assert (L + 2 - B) // B + 1 == 1, "AvgPool path assumes exactly one output window"

    vmem = pl.BlockSpec(memory_space=pltpu.MemorySpace.VMEM)
    out = pl.pallas_call(
        _generator_kernel,
        out_shape=jax.ShapeDtypeStruct((B, 2 * O), jnp.float32),
        in_specs=[vmem] * 5,
        out_specs=vmem,
        scratch_shapes=[pltpu.VMEM((B + 2 * PAD, N), jnp.float32)],
        compiler_params=pltpu.CompilerParams(vmem_limit_bytes=4 * 1024 * 1024),
    )(x, eps, params['slab_a'], params['slab_b'], params['w2'])

    return out[:, :O], out[:, O:]          # (mu, mu + std_weight * eps)


if __name__ == "__main__":
    key = jax.random.PRNGKey(0)
    k_param, k_x, k_eps = jax.random.split(key, 3)

    params = init_params(k_param)
    x = jax.random.normal(k_x, (BATCH, NOISE_DIM), jnp.float32)
    # torch.randn_like(mu) equivalent (deterministic here); std_weight == 0 at
    # init so out2 == mu.
    eps = jax.random.normal(k_eps, (BATCH, OUTPUT_DIM), jnp.float32)

    mu, out2 = jax.jit(generator_forward)(params, x, eps)
    jax.block_until_ready((mu, out2))

    assert mu.shape == (BATCH, OUTPUT_DIM)
    assert out2.shape == (BATCH, OUTPUT_DIM)
    assert bool(jnp.all(jnp.isfinite(mu))) and bool(jnp.all(jnp.isfinite(out2)))
    print("KERNEL_OK")
</pallas_src>

<mosaic_0001>
module attributes {stable_mosaic.version = 11 : i64} {
  func.func @_generator_kernel(%arg0: memref<8x4xf32, #tpu.memory_space<vmem>>, %arg1: memref<8x16xf32, #tpu.memory_space<vmem>>, %arg2: memref<64x32xf32, #tpu.memory_space<vmem>>, %arg3: memref<24x512xbf16, #tpu.memory_space<vmem>>, %arg4: memref<512x8xbf16, #tpu.memory_space<vmem>>, %arg5: memref<8x32xf32, #tpu.memory_space<vmem>>, %arg6: memref<14x4xf32, #tpu.memory_space<vmem>>) attributes {dimension_semantics = [], scalar_prefetch = 0 : i64, scratch_operands = 1 : i64, tpu.core_type = #tpu.core_type<tc>} {
    %c0 = arith.constant 0 : index
    %c0_0 = arith.constant 0 : index
    %0 = vector.load %arg0[%c0, %c0_0] : memref<8x4xf32, #tpu.memory_space<vmem>>, vector<8x4xf32>
    %c0_1 = arith.constant 0 : index
    %c0_2 = arith.constant 0 : index
    %1 = vector.load %arg3[%c0_1, %c0_2] : memref<24x512xbf16, #tpu.memory_space<vmem>>, vector<4x512xbf16>
    %2 = arith.truncf %0 : vector<8x4xf32> to vector<8x4xbf16>
    %cst = arith.constant dense<0.000000e+00> : vector<8x512xf32>
    %3 = tpu.matmul %2, %1, %cst {dimension_numbers = #tpu.dot_dimension_numbers<[1], [0], [0], [1], [0, 0, 1, 1], [], []>} : vector<8x4xbf16>, vector<4x512xbf16>, vector<8x512xf32> -> vector<8x512xf32>
    %cst_3 = arith.constant 0.000000e+00 : f32
    %4 = vector.broadcast %cst_3 : f32 to vector<14x4xf32>
    %c0_4 = arith.constant 0 : index
    %c0_5 = arith.constant 0 : index
    %5 = vector.load %arg6[%c0_4, %c0_5] : memref<14x4xf32, #tpu.memory_space<vmem>>, vector<14x4xf32>
    tpu.vector_store %arg6[%c0_4, %c0_5], %4 {strides = array<i32>} : memref<14x4xf32, #tpu.memory_space<vmem>>, vector<14x4xf32>,
    %c3 = arith.constant 3 : index
    %c0_6 = arith.constant 0 : index
    %6 = vector.load %arg6[%c3, %c0_6] : memref<14x4xf32, #tpu.memory_space<vmem>>, vector<8x4xf32>
    tpu.vector_store %arg6[%c3, %c0_6], %0 {strides = array<i32>} : memref<14x4xf32, #tpu.memory_space<vmem>>, vector<8x4xf32>,
    %c0_7 = arith.constant 0 : index
    %c0_8 = arith.constant 0 : index
    %7 = vector.load %arg6[%c0_7, %c0_8] : memref<14x4xf32, #tpu.memory_space<vmem>>, vector<14x4xf32>
    %c0_9 = arith.constant 0 : index
    %c0_10 = arith.constant 0 : index
    %8 = vector.load %arg2[%c0_9, %c0_10] : memref<64x32xf32, #tpu.memory_space<vmem>>, vector<24x32xf32>
    %9 = vector.extract_strided_slice %7 {offsets = [0, 0], sizes = [10, 4], strides = [1, 1]} : vector<14x4xf32> to vector<10x4xf32>
    %10 = vector.extract_strided_slice %8 {offsets = [0, 0], sizes = [4, 32], strides = [1, 1]} : vector<24x32xf32> to vector<4x32xf32>
    %cst_11 = arith.constant dense<0.000000e+00> : vector<10x32xf32>
    %11 = tpu.matmul %9, %10, %cst_11 {dimension_numbers = #tpu.dot_dimension_numbers<[1], [0], [0], [1], [0, 0, 1, 1], [], []>} : vector<10x4xf32>, vector<4x32xf32>, vector<10x32xf32> -> vector<10x32xf32>
    %12 = vector.extract_strided_slice %7 {offsets = [1, 0], sizes = [10, 4], strides = [1, 1]} : vector<14x4xf32> to vector<10x4xf32>
    %13 = vector.extract_strided_slice %8 {offsets = [4, 0], sizes = [4, 32], strides = [1, 1]} : vector<24x32xf32> to vector<4x32xf32>
    %cst_12 = arith.constant dense<0.000000e+00> : vector<10x32xf32>
    %14 = tpu.matmul %12, %13, %cst_12 {dimension_numbers = #tpu.dot_dimension_numbers<[1], [0], [0], [1], [0, 0, 1, 1], [], []>} : vector<10x4xf32>, vector<4x32xf32>, vector<10x32xf32> -> vector<10x32xf32>
    %15 = vector.extract_strided_slice %7 {offsets = [2, 0], sizes = [10, 4], strides = [1, 1]} : vector<14x4xf32> to vector<10x4xf32>
    %16 = vector.extract_strided_slice %8 {offsets = [8, 0], sizes = [4, 32], strides = [1, 1]} : vector<24x32xf32> to vector<4x32xf32>
    %cst_13 = arith.constant dense<0.000000e+00> : vector<10x32xf32>
    %17 = tpu.matmul %15, %16, %cst_13 {dimension_numbers = #tpu.dot_dimension_numbers<[1], [0], [0], [1], [0, 0, 1, 1], [], []>} : vector<10x4xf32>, vector<4x32xf32>, vector<10x32xf32> -> vector<10x32xf32>
    %18 = vector.extract_strided_slice %7 {offsets = [3, 0], sizes = [10, 4], strides = [1, 1]} : vector<14x4xf32> to vector<10x4xf32>
    %19 = vector.extract_strided_slice %8 {offsets = [12, 0], sizes = [4, 32], strides = [1, 1]} : vector<24x32xf32> to vector<4x32xf32>
    %cst_14 = arith.constant dense<0.000000e+00> : vector<10x32xf32>
    %20 = tpu.matmul %18, %19, %cst_14 {dimension_numbers = #tpu.dot_dimension_numbers<[1], [0], [0], [1], [0, 0, 1, 1], [], []>} : vector<10x4xf32>, vector<4x32xf32>, vector<10x32xf32> -> vector<10x32xf32>
    %21 = vector.extract_strided_slice %7 {offsets = [4, 0], sizes = [10, 4], strides = [1, 1]} : vector<14x4xf32> to vector<10x4xf32>
    %22 = vector.extract_strided_slice %8 {offsets = [16, 0], sizes = [4, 32], strides = [1, 1]} : vector<24x32xf32> to vector<4x32xf32>
    %cst_15 = arith.constant dense<0.000000e+00> : vector<10x32xf32>
    %23 = tpu.matmul %21, %22, %cst_15 {dimension_numbers = #tpu.dot_dimension_numbers<[1], [0], [0], [1], [0, 0, 1, 1], [], []>} : vector<10x4xf32>, vector<4x32xf32>, vector<10x32xf32> -> vector<10x32xf32>
    %24 = arith.addf %11, %14 : vector<10x32xf32>
    %25 = arith.addf %17, %20 : vector<10x32xf32>
    %26 = arith.addf %24, %25 : vector<10x32xf32>
    %27 = arith.addf %26, %23 : vector<10x32xf32>
    %28 = vector.extract_strided_slice %27 {offsets = [0, 0], sizes = [10, 8], strides = [1, 1]} : vector<10x32xf32> to vector<10x8xf32>
    %cst_16 = arith.constant dense<0.000000e+00> : vector<8xf32>
    %29 = vector.multi_reduction <add>, %28, %cst_16 [0] : vector<10x8xf32> to vector<8xf32>
    %30 = vector.shape_cast %29 : vector<8xf32> to vector<1x8xf32>
    %cst_17 = arith.constant 1.000000e+01 : f32
    %31 = vector.broadcast %cst_17 : f32 to vector<1x8xf32>
    %32 = arith.divf %30, %31 : vector<1x8xf32>
    %33 = vector.broadcast %32 : vector<1x8xf32> to vector<10x8xf32>
    %34 = arith.subf %28, %33 : vector<10x8xf32>
    %35 = arith.mulf %34, %34 : vector<10x8xf32>
    %cst_18 = arith.constant dense<0.000000e+00> : vector<8xf32>
    %36 = vector.multi_reduction <add>, %35, %cst_18 [0] : vector<10x8xf32> to vector<8xf32>
    %37 = vector.shape_cast %36 : vector<8xf32> to vector<1x8xf32>
    %cst_19 = arith.constant 1.000000e+01 : f32
    %38 = vector.broadcast %cst_19 : f32 to vector<1x8xf32>
    %39 = arith.divf %37, %38 : vector<1x8xf32>
    %40 = vector.broadcast %32 : vector<1x8xf32> to vector<10x8xf32>
    %41 = arith.subf %28, %40 : vector<10x8xf32>
    %cst_20 = arith.constant 9.99999974E-6 : f32
    %42 = vector.broadcast %cst_20 : f32 to vector<1x8xf32>
    %43 = arith.addf %39, %42 : vector<1x8xf32>
    %44 = math.rsqrt %43 : vector<1x8xf32>
    %45 = vector.broadcast %44 : vector<1x8xf32> to vector<10x8xf32>
    %46 = arith.mulf %41, %45 : vector<10x8xf32>
    %cst_21 = arith.constant 2.000000e+01 : f32
    %47 = vector.broadcast %cst_21 : f32 to vector<10x8xf32>
    %48 = arith.cmpf ogt, %46, %47 : vector<10x8xf32>
    %cst_22 = arith.constant 2.000000e+01 : f32
    %49 = vector.broadcast %cst_22 : f32 to vector<10x8xf32>
    %50 = arith.minimumf %46, %49 : vector<10x8xf32>
    %51 = math.exp %50 : vector<10x8xf32>
    %52 = math.log1p %51 : vector<10x8xf32>
    %53 = arith.select %48, %46, %52 : vector<10x8xi1>, vector<10x8xf32>
    %54 = math.tanh %53 : vector<10x8xf32>
    %55 = arith.mulf %46, %54 : vector<10x8xf32>
    %56 = vector.extract_strided_slice %55 {offsets = [0, 0], sizes = [7, 8], strides = [1, 1]} : vector<10x8xf32> to vector<7x8xf32>
    %cst_23 = arith.constant dense<0.000000e+00> : vector<8xf32>
    %57 = vector.multi_reduction <add>, %56, %cst_23 [0] : vector<7x8xf32> to vector<8xf32>
    %58 = vector.shape_cast %57 : vector<8xf32> to vector<1x8xf32>
    %cst_24 = arith.constant 1.250000e-01 : f32
    %59 = vector.broadcast %cst_24 : f32 to vector<1x8xf32>
    %60 = arith.mulf %58, %59 : vector<1x8xf32>
    %c24 = arith.constant 24 : index
    %c0_25 = arith.constant 0 : index
    %61 = vector.load %arg2[%c24, %c0_25] : memref<64x32xf32, #tpu.memory_space<vmem>>, vector<8x32xf32>
    %62 = vector.extract_strided_slice %61 {offsets = [0, 0], sizes = [1, 32], strides = [1, 1]} : vector<8x32xf32> to vector<1x32xf32>
    %63 = vector.extract_strided_slice %61 {offsets = [1, 0], sizes = [1, 32], strides = [1, 1]} : vector<8x32xf32> to vector<1x32xf32>
    %64 = vector.extract_strided_slice %61 {offsets = [2, 0], sizes = [1, 32], strides = [1, 1]} : vector<8x32xf32> to vector<1x32xf32>
    %65 = vector.extract_strided_slice %61 {offsets = [3, 0], sizes = [1, 8], strides = [1, 1]} : vector<8x32xf32> to vector<1x8xf32>
    %66 = vector.extract_strided_slice %61 {offsets = [4, 0], sizes = [1, 16], strides = [1, 1]} : vector<8x32xf32> to vector<1x16xf32>
    %67 = vector.extract_strided_slice %61 {offsets = [5, 0], sizes = [1, 16], strides = [1, 1]} : vector<8x32xf32> to vector<1x16xf32>
    %c32 = arith.constant 32 : index
    %c0_26 = arith.constant 0 : index
    %68 = vector.load %arg2[%c32, %c0_26] : memref<64x32xf32, #tpu.memory_space<vmem>>, vector<8x32xf32>
    %c40 = arith.constant 40 : index
    %c0_27 = arith.constant 0 : index
    %69 = vector.load %arg2[%c40, %c0_27] : memref<64x32xf32, #tpu.memory_space<vmem>>, vector<8x32xf32>
    %c48 = arith.constant 48 : index
    %c0_28 = arith.constant 0 : index
    %70 = vector.load %arg2[%c48, %c0_28] : memref<64x32xf32, #tpu.memory_space<vmem>>, vector<8x32xf32>
    %71 = tpu.iota {dimensions = array<i32: 0>} : vector<8x8xi32>
    %72 = tpu.iota {dimensions = array<i32: 1>} : vector<8x8xi32>
    %73 = arith.cmpi eq, %71, %72 : vector<8x8xi32>
    %74 = arith.extui %73 : vector<8x8xi1> to vector<8x8xi32>
    %75 = arith.sitofp %74 : vector<8x8xi32> to vector<8x8xf32>
    %76 = vector.broadcast %60 : vector<1x8xf32> to vector<8x8xf32>
    %77 = arith.mulf %76, %75 : vector<8x8xf32>
    %cst_29 = arith.constant dense<0.000000e+00> : vector<8xf32>
    %78 = vector.multi_reduction <add>, %77, %cst_29 [1] : vector<8x8xf32> to vector<8xf32>
    %79 = vector.shape_cast %78 : vector<8xf32> to vector<8x1xf32>
    %80 = vector.broadcast %79 : vector<8x1xf32> to vector<8x32xf32>
    %81 = vector.broadcast %62 : vector<1x32xf32> to vector<8x32xf32>
    %82 = arith.mulf %80, %81 : vector<8x32xf32>
    %83 = vector.broadcast %63 : vector<1x32xf32> to vector<8x32xf32>
    %84 = arith.addf %82, %83 : vector<8x32xf32>
    %cst_30 = arith.constant 0.000000e+00 : f32
    %85 = vector.broadcast %cst_30 : f32 to vector<1x8xf32>
    %cst_31 = arith.constant 0.000000e+00 : f32
    %86 = vector.broadcast %cst_31 : f32 to vector<1x8xf32>
    %cst_32 = arith.constant 0.000000e+00 : f32
    %87 = vector.broadcast %cst_32 : f32 to vector<1x8xf32>
    %cst_33 = arith.constant 0.000000e+00 : f32
    %88 = vector.broadcast %cst_33 : f32 to vector<1x8xf32>
    %89 = vector.broadcast %85 : vector<1x8xf32> to vector<8x8xf32>
    %90 = arith.mulf %89, %75 : vector<8x8xf32>
    %cst_34 = arith.constant dense<0.000000e+00> : vector<8xf32>
    %91 = vector.multi_reduction <add>, %90, %cst_34 [1] : vector<8x8xf32> to vector<8xf32>
    %92 = vector.shape_cast %91 : vector<8xf32> to vector<8x1xf32>
    %93 = vector.broadcast %92 : vector<8x1xf32> to vector<8x32xf32>
    %94 = arith.mulf %93, %68 : vector<8x32xf32>
    %cst_35 = arith.constant dense<0.000000e+00> : vector<32xf32>
    %95 = vector.multi_reduction <add>, %94, %cst_35 [0] : vector<8x32xf32> to vector<32xf32>
    %96 = vector.shape_cast %95 : vector<32xf32> to vector<1x32xf32>
    %97 = vector.extract_strided_slice %84 {offsets = [0, 0], sizes = [1, 32], strides = [1, 1]} : vector<8x32xf32> to vector<1x32xf32>
    %98 = arith.addf %97, %96 : vector<1x32xf32>
    %99 = arith.negf %98 : vector<1x32xf32>
    %100 = math.exp %99 : vector<1x32xf32>
    %cst_36 = arith.constant 1.000000e+00 : f32
    %101 = vector.broadcast %cst_36 : f32 to vector<1x32xf32>
    %102 = arith.addf %101, %100 : vector<1x32xf32>
    %103 = arith.divf %101, %102 : vector<1x32xf32>
    %104 = math.tanh %98 : vector<1x32xf32>
    %105 = vector.extract_strided_slice %103 {offsets = [0, 0], sizes = [1, 8], strides = [1, 1]} : vector<1x32xf32> to vector<1x8xf32>
    %106 = vector.extract_strided_slice %103 {offsets = [0, 8], sizes = [1, 8], strides = [1, 1]} : vector<1x32xf32> to vector<1x8xf32>
    %107 = vector.extract_strided_slice %103 {offsets = [0, 24], sizes = [1, 8], strides = [1, 1]} : vector<1x32xf32> to vector<1x8xf32>
    %108 = vector.extract_strided_slice %104 {offsets = [0, 16], sizes = [1, 8], strides = [1, 1]} : vector<1x32xf32> to vector<1x8xf32>
    %109 = arith.mulf %106, %86 : vector<1x8xf32>
    %110 = arith.mulf %105, %108 : vector<1x8xf32>
    %111 = arith.addf %109, %110 : vector<1x8xf32>
    %112 = math.tanh %111 : vector<1x8xf32>
    %113 = arith.mulf %107, %112 : vector<1x8xf32>
    %114 = vector.broadcast %113 : vector<1x8xf32> to vector<8x8xf32>
    %115 = arith.mulf %114, %75 : vector<8x8xf32>
    %cst_37 = arith.constant dense<0.000000e+00> : vector<8xf32>
    %116 = vector.multi_reduction <add>, %115, %cst_37 [1] : vector<8x8xf32> to vector<8xf32>
    %117 = vector.shape_cast %116 : vector<8xf32> to vector<8x1xf32>
    %118 = vector.broadcast %117 : vector<8x1xf32> to vector<8x32xf32>
    %119 = arith.mulf %118, %69 : vector<8x32xf32>
    %120 = vector.broadcast %87 : vector<1x8xf32> to vector<8x8xf32>
    %121 = arith.mulf %120, %75 : vector<8x8xf32>
    %cst_38 = arith.constant dense<0.000000e+00> : vector<8xf32>
    %122 = vector.multi_reduction <add>, %121, %cst_38 [1] : vector<8x8xf32> to vector<8xf32>
    %123 = vector.shape_cast %122 : vector<8xf32> to vector<8x1xf32>
    %124 = vector.broadcast %123 : vector<8x1xf32> to vector<8x32xf32>
    %125 = arith.mulf %124, %70 : vector<8x32xf32>
    %126 = arith.addf %119, %125 : vector<8x32xf32>
    %cst_39 = arith.constant dense<0.000000e+00> : vector<32xf32>
    %127 = vector.multi_reduction <add>, %126, %cst_39 [0] : vector<8x32xf32> to vector<32xf32>
    %128 = vector.shape_cast %127 : vector<32xf32> to vector<1x32xf32>
    %129 = arith.addf %128, %64 : vector<1x32xf32>
    %130 = arith.negf %129 : vector<1x32xf32>
    %131 = math.exp %130 : vector<1x32xf32>
    %cst_40 = arith.constant 1.000000e+00 : f32
    %132 = vector.broadcast %cst_40 : f32 to vector<1x32xf32>
    %133 = arith.addf %132, %131 : vector<1x32xf32>
    %134 = arith.divf %132, %133 : vector<1x32xf32>
    %135 = math.tanh %129 : vector<1x32xf32>
    %136 = vector.extract_strided_slice %134 {offsets = [0, 0], sizes = [1, 8], strides = [1, 1]} : vector<1x32xf32> to vector<1x8xf32>
    %137 = vector.extract_strided_slice %134 {offsets = [0, 8], sizes = [1, 8], strides = [1, 1]} : vector<1x32xf32> to vector<1x8xf32>
    %138 = vector.extract_strided_slice %134 {offsets = [0, 24], sizes = [1, 8], strides = [1, 1]} : vector<1x32xf32> to vector<1x8xf32>
    %139 = vector.extract_strided_slice %135 {offsets = [0, 16], sizes = [1, 8], strides = [1, 1]} : vector<1x32xf32> to vector<1x8xf32>
    %140 = arith.mulf %137, %88 : vector<1x8xf32>
    %141 = arith.mulf %136, %139 : vector<1x8xf32>
    %142 = arith.addf %140, %141 : vector<1x8xf32>
    %143 = math.tanh %142 : vector<1x8xf32>
    %144 = arith.mulf %138, %143 : vector<1x8xf32>
    %145 = vector.broadcast %113 : vector<1x8xf32> to vector<8x8xf32>
    %146 = arith.mulf %145, %75 : vector<8x8xf32>
    %cst_41 = arith.constant dense<0.000000e+00> : vector<8xf32>
    %147 = vector.multi_reduction <add>, %146, %cst_41 [1] : vector<8x8xf32> to vector<8xf32>
    %148 = vector.shape_cast %147 : vector<8xf32> to vector<8x1xf32>
    %149 = vector.broadcast %148 : vector<8x1xf32> to vector<8x32xf32>
    %150 = arith.mulf %149, %68 : vector<8x32xf32>
    %cst_42 = arith.constant dense<0.000000e+00> : vector<32xf32>
    %151 = vector.multi_reduction <add>, %150, %cst_42 [0] : vector<8x32xf32> to vector<32xf32>
    %152 = vector.shape_cast %151 : vector<32xf32> to vector<1x32xf32>
    %153 = vector.extract_strided_slice %84 {offsets = [1, 0], sizes = [1, 32], strides = [1, 1]} : vector<8x32xf32> to vector<1x32xf32>
    %154 = arith.addf %153, %152 : vector<1x32xf32>
    %155 = arith.negf %154 : vector<1x32xf32>
    %156 = math.exp %155 : vector<1x32xf32>
    %cst_43 = arith.constant 1.000000e+00 : f32
    %157 = vector.broadcast %cst_43 : f32 to vector<1x32xf32>
    %158 = arith.addf %157, %156 : vector<1x32xf32>
    %159 = arith.divf %157, %158 : vector<1x32xf32>
    %160 = math.tanh %154 : vector<1x32xf32>
    %161 = vector.extract_strided_slice %159 {offsets = [0, 0], sizes = [1, 8], strides = [1, 1]} : vector<1x32xf32> to vector<1x8xf32>
    %162 = vector.extract_strided_slice %159 {offsets = [0, 8], sizes = [1, 8], strides = [1, 1]} : vector<1x32xf32> to vector<1x8xf32>
    %163 = vector.extract_strided_slice %159 {offsets = [0, 24], sizes = [1, 8], strides = [1, 1]} : vector<1x32xf32> to vector<1x8xf32>
    %164 = vector.extract_strided_slice %160 {offsets = [0, 16], sizes = [1, 8], strides = [1, 1]} : vector<1x32xf32> to vector<1x8xf32>
    %165 = arith.mulf %162, %111 : vector<1x8xf32>
    %166 = arith.mulf %161, %164 : vector<1x8xf32>
    %167 = arith.addf %165, %166 : vector<1x8xf32>
    %168 = math.tanh %167 : vector<1x8xf32>
    %169 = arith.mulf %163, %168 : vector<1x8xf32>
    %170 = vector.broadcast %169 : vector<1x8xf32> to vector<8x8xf32>
    %171 = arith.mulf %170, %75 : vector<8x8xf32>
    %cst_44 = arith.constant dense<0.000000e+00> : vector<8xf32>
    %172 = vector.multi_reduction <add>, %171, %cst_44 [1] : vector<8x8xf32> to vector<8xf32>
    %173 = vector.shape_cast %172 : vector<8xf32> to vector<8x1xf32>
    %174 = vector.broadcast %173 : vector<8x1xf32> to vector<8x32xf32>
    %175 = arith.mulf %174, %69 : vector<8x32xf32>
    %176 = vector.broadcast %144 : vector<1x8xf32> to vector<8x8xf32>
    %177 = arith.mulf %176, %75 : vector<8x8xf32>
    %cst_45 = arith.constant dense<0.000000e+00> : vector<8xf32>
    %178 = vector.multi_reduction <add>, %177, %cst_45 [1] : vector<8x8xf32> to vector<8xf32>
    %179 = vector.shape_cast %178 : vector<8xf32> to vector<8x1xf32>
    %180 = vector.broadcast %179 : vector<8x1xf32> to vector<8x32xf32>
    %181 = arith.mulf %180, %70 : vector<8x32xf32>
    %182 = arith.addf %175, %181 : vector<8x32xf32>
    %cst_46 = arith.constant dense<0.000000e+00> : vector<32xf32>
    %183 = vector.multi_reduction <add>, %182, %cst_46 [0] : vector<8x32xf32> to vector<32xf32>
    %184 = vector.shape_cast %183 : vector<32xf32> to vector<1x32xf32>
    %185 = arith.addf %184, %64 : vector<1x32xf32>
    %186 = arith.negf %185 : vector<1x32xf32>
    %187 = math.exp %186 : vector<1x32xf32>
    %cst_47 = arith.constant 1.000000e+00 : f32
    %188 = vector.broadcast %cst_47 : f32 to vector<1x32xf32>
    %189 = arith.addf %188, %187 : vector<1x32xf32>
    %190 = arith.divf %188, %189 : vector<1x32xf32>
    %191 = math.tanh %185 : vector<1x32xf32>
    %192 = vector.extract_strided_slice %190 {offsets = [0, 0], sizes = [1, 8], strides = [1, 1]} : vector<1x32xf32> to vector<1x8xf32>
    %193 = vector.extract_strided_slice %190 {offsets = [0, 8], sizes = [1, 8], strides = [1, 1]} : vector<1x32xf32> to vector<1x8xf32>
    %194 = vector.extract_strided_slice %190 {offsets = [0, 24], sizes = [1, 8], strides = [1, 1]} : vector<1x32xf32> to vector<1x8xf32>
    %195 = vector.extract_strided_slice %191 {offsets = [0, 16], sizes = [1, 8], strides = [1, 1]} : vector<1x32xf32> to vector<1x8xf32>
    %196 = arith.mulf %193, %142 : vector<1x8xf32>
    %197 = arith.mulf %192, %195 : vector<1x8xf32>
    %198 = arith.addf %196, %197 : vector<1x8xf32>
    %199 = math.tanh %198 : vector<1x8xf32>
    %200 = arith.mulf %194, %199 : vector<1x8xf32>
    %201 = vector.broadcast %169 : vector<1x8xf32> to vector<8x8xf32>
    %202 = arith.mulf %201, %75 : vector<8x8xf32>
    %cst_48 = arith.constant dense<0.000000e+00> : vector<8xf32>
    %203 = vector.multi_reduction <add>, %202, %cst_48 [1] : vector<8x8xf32> to vector<8xf32>
    %204 = vector.shape_cast %203 : vector<8xf32> to vector<8x1xf32>
    %205 = vector.broadcast %204 : vector<8x1xf32> to vector<8x32xf32>
    %206 = arith.mulf %205, %68 : vector<8x32xf32>
    %cst_49 = arith.constant dense<0.000000e+00> : vector<32xf32>
    %207 = vector.multi_reduction <add>, %206, %cst_49 [0] : vector<8x32xf32> to vector<32xf32>
    %208 = vector.shape_cast %207 : vector<32xf32> to vector<1x32xf32>
    %209 = vector.extract_strided_slice %84 {offsets = [2, 0], sizes = [1, 32], strides = [1, 1]} : vector<8x32xf32> to vector<1x32xf32>
    %210 = arith.addf %209, %208 : vector<1x32xf32>
    %211 = arith.negf %210 : vector<1x32xf32>
    %212 = math.exp %211 : vector<1x32xf32>
    %cst_50 = arith.constant 1.000000e+00 : f32
    %213 = vector.broadcast %cst_50 : f32 to vector<1x32xf32>
    %214 = arith.addf %213, %212 : vector<1x32xf32>
    %215 = arith.divf %213, %214 : vector<1x32xf32>
    %216 = math.tanh %210 : vector<1x32xf32>
    %217 = vector.extract_strided_slice %215 {offsets = [0, 0], sizes = [1, 8], strides = [1, 1]} : vector<1x32xf32> to vector<1x8xf32>
    %218 = vector.extract_strided_slice %215 {offsets = [0, 8], sizes = [1, 8], strides = [1, 1]} : vector<1x32xf32> to vector<1x8xf32>
    %219 = vector.extract_strided_slice %215 {offsets = [0, 24], sizes = [1, 8], strides = [1, 1]} : vector<1x32xf32> to vector<1x8xf32>
    %220 = vector.extract_strided_slice %216 {offsets = [0, 16], sizes = [1, 8], strides = [1, 1]} : vector<1x32xf32> to vector<1x8xf32>
    %221 = arith.mulf %218, %167 : vector<1x8xf32>
    %222 = arith.mulf %217, %220 : vector<1x8xf32>
    %223 = arith.addf %221, %222 : vector<1x8xf32>
    %224 = math.tanh %223 : vector<1x8xf32>
    %225 = arith.mulf %219, %224 : vector<1x8xf32>
    %226 = vector.broadcast %225 : vector<1x8xf32> to vector<8x8xf32>
    %227 = arith.mulf %226, %75 : vector<8x8xf32>
    %cst_51 = arith.constant dense<0.000000e+00> : vector<8xf32>
    %228 = vector.multi_reduction <add>, %227, %cst_51 [1] : vector<8x8xf32> to vector<8xf32>
    %229 = vector.shape_cast %228 : vector<8xf32> to vector<8x1xf32>
    %230 = vector.broadcast %229 : vector<8x1xf32> to vector<8x32xf32>
    %231 = arith.mulf %230, %69 : vector<8x32xf32>
    %232 = vector.broadcast %200 : vector<1x8xf32> to vector<8x8xf32>
    %233 = arith.mulf %232, %75 : vector<8x8xf32>
    %cst_52 = arith.constant dense<0.000000e+00> : vector<8xf32>
    %234 = vector.multi_reduction <add>, %233, %cst_52 [1] : vector<8x8xf32> to vector<8xf32>
    %235 = vector.shape_cast %234 : vector<8xf32> to vector<8x1xf32>
    %236 = vector.broadcast %235 : vector<8x1xf32> to vector<8x32xf32>
    %237 = arith.mulf %236, %70 : vector<8x32xf32>
    %238 = arith.addf %231, %237 : vector<8x32xf32>
    %cst_53 = arith.constant dense<0.000000e+00> : vector<32xf32>
    %239 = vector.multi_reduction <add>, %238, %cst_53 [0] : vector<8x32xf32> to vector<32xf32>
    %240 = vector.shape_cast %239 : vector<32xf32> to vector<1x32xf32>
    %241 = arith.addf %240, %64 : vector<1x32xf32>
    %242 = arith.negf %241 : vector<1x32xf32>
    %243 = math.exp %242 : vector<1x32xf32>
    %cst_54 = arith.constant 1.000000e+00 : f32
    %244 = vector.broadcast %cst_54 : f32 to vector<1x32xf32>
    %245 = arith.addf %244, %243 : vector<1x32xf32>
    %246 = arith.divf %244, %245 : vector<1x32xf32>
    %247 = math.tanh %241 : vector<1x32xf32>
    %248 = vector.extract_strided_slice %246 {offsets = [0, 0], sizes = [1, 8], strides = [1, 1]} : vector<1x32xf32> to vector<1x8xf32>
    %249 = vector.extract_strided_slice %246 {offsets = [0, 8], sizes = [1, 8], strides = [1, 1]} : vector<1x32xf32> to vector<1x8xf32>
    %250 = vector.extract_strided_slice %246 {offsets = [0, 24], sizes = [1, 8], strides = [1, 1]} : vector<1x32xf32> to vector<1x8xf32>
    %251 = vector.extract_strided_slice %247 {offsets = [0, 16], sizes = [1, 8], strides = [1, 1]} : vector<1x32xf32> to vector<1x8xf32>
    %252 = arith.mulf %249, %198 : vector<1x8xf32>
    %253 = arith.mulf %248, %251 : vector<1x8xf32>
    %254 = arith.addf %252, %253 : vector<1x8xf32>
    %255 = math.tanh %254 : vector<1x8xf32>
    %256 = arith.mulf %250, %255 : vector<1x8xf32>
    %257 = vector.broadcast %225 : vector<1x8xf32> to vector<8x8xf32>
    %258 = arith.mulf %257, %75 : vector<8x8xf32>
    %cst_55 = arith.constant dense<0.000000e+00> : vector<8xf32>
    %259 = vector.multi_reduction <add>, %258, %cst_55 [1] : vector<8x8xf32> to vector<8xf32>
    %260 = vector.shape_cast %259 : vector<8xf32> to vector<8x1xf32>
    %261 = vector.broadcast %260 : vector<8x1xf32> to vector<8x32xf32>
    %262 = arith.mulf %261, %68 : vector<8x32xf32>
    %cst_56 = arith.constant dense<0.000000e+00> : vector<32xf32>
    %263 = vector.multi_reduction <add>, %262, %cst_56 [0] : vector<8x32xf32> to vector<32xf32>
    %264 = vector.shape_cast %263 : vector<32xf32> to vector<1x32xf32>
    %265 = vector.extract_strided_slice %84 {offsets = [3, 0], sizes = [1, 32], strides = [1, 1]} : vector<8x32xf32> to vector<1x32xf32>
    %266 = arith.addf %265, %264 : vector<1x32xf32>
    %267 = arith.negf %266 : vector<1x32xf32>
    %268 = math.exp %267 : vector<1x32xf32>
    %cst_57 = arith.constant 1.000000e+00 : f32
    %269 = vector.broadcast %cst_57 : f32 to vector<1x32xf32>
    %270 = arith.addf %269, %268 : vector<1x32xf32>
    %271 = arith.divf %269, %270 : vector<1x32xf32>
    %272 = math.tanh %266 : vector<1x32xf32>
    %273 = vector.extract_strided_slice %271 {offsets = [0, 0], sizes = [1, 8], strides = [1, 1]} : vector<1x32xf32> to vector<1x8xf32>
    %274 = vector.extract_strided_slice %271 {offsets = [0, 8], sizes = [1, 8], strides = [1, 1]} : vector<1x32xf32> to vector<1x8xf32>
    %275 = vector.extract_strided_slice %271 {offsets = [0, 24], sizes = [1, 8], strides = [1, 1]} : vector<1x32xf32> to vector<1x8xf32>
    %276 = vector.extract_strided_slice %272 {offsets = [0, 16], sizes = [1, 8], strides = [1, 1]} : vector<1x32xf32> to vector<1x8xf32>
    %277 = arith.mulf %274, %223 : vector<1x8xf32>
    %278 = arith.mulf %273, %276 : vector<1x8xf32>
    %279 = arith.addf %277, %278 : vector<1x8xf32>
    %280 = math.tanh %279 : vector<1x8xf32>
    %281 = arith.mulf %275, %280 : vector<1x8xf32>
    %282 = vector.broadcast %281 : vector<1x8xf32> to vector<8x8xf32>
    %283 = arith.mulf %282, %75 : vector<8x8xf32>
    %cst_58 = arith.constant dense<0.000000e+00> : vector<8xf32>
    %284 = vector.multi_reduction <add>, %283, %cst_58 [1] : vector<8x8xf32> to vector<8xf32>
    %285 = vector.shape_cast %284 : vector<8xf32> to vector<8x1xf32>
    %286 = vector.broadcast %285 : vector<8x1xf32> to vector<8x32xf32>
    %287 = arith.mulf %286, %69 : vector<8x32xf32>
    %288 = vector.broadcast %256 : vector<1x8xf32> to vector<8x8xf32>
    %289 = arith.mulf %288, %75 : vector<8x8xf32>
    %cst_59 = arith.constant dense<0.000000e+00> : vector<8xf32>
    %290 = vector.multi_reduction <add>, %289, %cst_59 [1] : vector<8x8xf32> to vector<8xf32>
    %291 = vector.shape_cast %290 : vector<8xf32> to vector<8x1xf32>
    %292 = vector.broadcast %291 : vector<8x1xf32> to vector<8x32xf32>
    %293 = arith.mulf %292, %70 : vector<8x32xf32>
    %294 = arith.addf %287, %293 : vector<8x32xf32>
    %cst_60 = arith.constant dense<0.000000e+00> : vector<32xf32>
    %295 = vector.multi_reduction <add>, %294, %cst_60 [0] : vector<8x32xf32> to vector<32xf32>
    %296 = vector.shape_cast %295 : vector<32xf32> to vector<1x32xf32>
    %297 = arith.addf %296, %64 : vector<1x32xf32>
    %298 = arith.negf %297 : vector<1x32xf32>
    %299 = math.exp %298 : vector<1x32xf32>
    %cst_61 = arith.constant 1.000000e+00 : f32
    %300 = vector.broadcast %cst_61 : f32 to vector<1x32xf32>
    %301 = arith.addf %300, %299 : vector<1x32xf32>
    %302 = arith.divf %300, %301 : vector<1x32xf32>
    %303 = math.tanh %297 : vector<1x32xf32>
    %304 = vector.extract_strided_slice %302 {offsets = [0, 0], sizes = [1, 8], strides = [1, 1]} : vector<1x32xf32> to vector<1x8xf32>
    %305 = vector.extract_strided_slice %302 {offsets = [0, 8], sizes = [1, 8], strides = [1, 1]} : vector<1x32xf32> to vector<1x8xf32>
    %306 = vector.extract_strided_slice %302 {offsets = [0, 24], sizes = [1, 8], strides = [1, 1]} : vector<1x32xf32> to vector<1x8xf32>
    %307 = vector.extract_strided_slice %303 {offsets = [0, 16], sizes = [1, 8], strides = [1, 1]} : vector<1x32xf32> to vector<1x8xf32>
    %308 = arith.mulf %305, %254 : vector<1x8xf32>
    %309 = arith.mulf %304, %307 : vector<1x8xf32>
    %310 = arith.addf %308, %309 : vector<1x8xf32>
    %311 = math.tanh %310 : vector<1x8xf32>
    %312 = arith.mulf %306, %311 : vector<1x8xf32>
    %313 = vector.broadcast %281 : vector<1x8xf32> to vector<8x8xf32>
    %314 = arith.mulf %313, %75 : vector<8x8xf32>
    %cst_62 = arith.constant dense<0.000000e+00> : vector<8xf32>
    %315 = vector.multi_reduction <add>, %314, %cst_62 [1] : vector<8x8xf32> to vector<8xf32>
    %316 = vector.shape_cast %315 : vector<8xf32> to vector<8x1xf32>
    %317 = vector.broadcast %316 : vector<8x1xf32> to vector<8x32xf32>
    %318 = arith.mulf %317, %68 : vector<8x32xf32>
    %cst_63 = arith.constant dense<0.000000e+00> : vector<32xf32>
    %319 = vector.multi_reduction <add>, %318, %cst_63 [0] : vector<8x32xf32> to vector<32xf32>
    %320 = vector.shape_cast %319 : vector<32xf32> to vector<1x32xf32>
    %321 = vector.extract_strided_slice %84 {offsets = [4, 0], sizes = [1, 32], strides = [1, 1]} : vector<8x32xf32> to vector<1x32xf32>
    %322 = arith.addf %321, %320 : vector<1x32xf32>
    %323 = arith.negf %322 : vector<1x32xf32>
    %324 = math.exp %323 : vector<1x32xf32>
    %cst_64 = arith.constant 1.000000e+00 : f32
    %325 = vector.broadcast %cst_64 : f32 to vector<1x32xf32>
    %326 = arith.addf %325, %324 : vector<1x32xf32>
    %327 = arith.divf %325, %326 : vector<1x32xf32>
    %328 = math.tanh %322 : vector<1x32xf32>
    %329 = vector.extract_strided_slice %327 {offsets = [0, 0], sizes = [1, 8], strides = [1, 1]} : vector<1x32xf32> to vector<1x8xf32>
    %330 = vector.extract_strided_slice %327 {offsets = [0, 8], sizes = [1, 8], strides = [1, 1]} : vector<1x32xf32> to vector<1x8xf32>
    %331 = vector.extract_strided_slice %327 {offsets = [0, 24], sizes = [1, 8], strides = [1, 1]} : vector<1x32xf32> to vector<1x8xf32>
    %332 = vector.extract_strided_slice %328 {offsets = [0, 16], sizes = [1, 8], strides = [1, 1]} : vector<1x32xf32> to vector<1x8xf32>
    %333 = arith.mulf %330, %279 : vector<1x8xf32>
    %334 = arith.mulf %329, %332 : vector<1x8xf32>
    %335 = arith.addf %333, %334 : vector<1x8xf32>
    %336 = math.tanh %335 : vector<1x8xf32>
    %337 = arith.mulf %331, %336 : vector<1x8xf32>
    %338 = vector.broadcast %337 : vector<1x8xf32> to vector<8x8xf32>
    %339 = arith.mulf %338, %75 : vector<8x8xf32>
    %cst_65 = arith.constant dense<0.000000e+00> : vector<8xf32>
    %340 = vector.multi_reduction <add>, %339, %cst_65 [1] : vector<8x8xf32> to vector<8xf32>
    %341 = vector.shape_cast %340 : vector<8xf32> to vector<8x1xf32>
    %342 = vector.broadcast %341 : vector<8x1xf32> to vector<8x32xf32>
    %343 = arith.mulf %342, %69 : vector<8x32xf32>
    %344 = vector.broadcast %312 : vector<1x8xf32> to vector<8x8xf32>
    %345 = arith.mulf %344, %75 : vector<8x8xf32>
    %cst_66 = arith.constant dense<0.000000e+00> : vector<8xf32>
    %346 = vector.multi_reduction <add>, %345, %cst_66 [1] : vector<8x8xf32> to vector<8xf32>
    %347 = vector.shape_cast %346 : vector<8xf32> to vector<8x1xf32>
    %348 = vector.broadcast %347 : vector<8x1xf32> to vector<8x32xf32>
    %349 = arith.mulf %348, %70 : vector<8x32xf32>
    %350 = arith.addf %343, %349 : vector<8x32xf32>
    %cst_67 = arith.constant dense<0.000000e+00> : vector<32xf32>
    %351 = vector.multi_reduction <add>, %350, %cst_67 [0] : vector<8x32xf32> to vector<32xf32>
    %352 = vector.shape_cast %351 : vector<32xf32> to vector<1x32xf32>
    %353 = arith.addf %352, %64 : vector<1x32xf32>
    %354 = arith.negf %353 : vector<1x32xf32>
    %355 = math.exp %354 : vector<1x32xf32>
    %cst_68 = arith.constant 1.000000e+00 : f32
    %356 = vector.broadcast %cst_68 : f32 to vector<1x32xf32>
    %357 = arith.addf %356, %355 : vector<1x32xf32>
    %358 = arith.divf %356, %357 : vector<1x32xf32>
    %359 = math.tanh %353 : vector<1x32xf32>
    %360 = vector.extract_strided_slice %358 {offsets = [0, 0], sizes = [1, 8], strides = [1, 1]} : vector<1x32xf32> to vector<1x8xf32>
    %361 = vector.extract_strided_slice %358 {offsets = [0, 8], sizes = [1, 8], strides = [1, 1]} : vector<1x32xf32> to vector<1x8xf32>
    %362 = vector.extract_strided_slice %358 {offsets = [0, 24], sizes = [1, 8], strides = [1, 1]} : vector<1x32xf32> to vector<1x8xf32>
    %363 = vector.extract_strided_slice %359 {offsets = [0, 16], sizes = [1, 8], strides = [1, 1]} : vector<1x32xf32> to vector<1x8xf32>
    %364 = arith.mulf %361, %310 : vector<1x8xf32>
    %365 = arith.mulf %360, %363 : vector<1x8xf32>
    %366 = arith.addf %364, %365 : vector<1x8xf32>
    %367 = math.tanh %366 : vector<1x8xf32>
    %368 = arith.mulf %362, %367 : vector<1x8xf32>
    %369 = vector.broadcast %337 : vector<1x8xf32> to vector<8x8xf32>
    %370 = arith.mulf %369, %75 : vector<8x8xf32>
    %cst_69 = arith.constant dense<0.000000e+00> : vector<8xf32>
    %371 = vector.multi_reduction <add>, %370, %cst_69 [1] : vector<8x8xf32> to vector<8xf32>
    %372 = vector.shape_cast %371 : vector<8xf32> to vector<8x1xf32>
    %373 = vector.broadcast %372 : vector<8x1xf32> to vector<8x32xf32>
    %374 = arith.mulf %373, %68 : vector<8x32xf32>
    %cst_70 = arith.constant dense<0.000000e+00> : vector<32xf32>
    %375 = vector.multi_reduction <add>, %374, %cst_70 [0] : vector<8x32xf32> to vector<32xf32>
    %376 = vector.shape_cast %375 : vector<32xf32> to vector<1x32xf32>
    %377 = vector.extract_strided_slice %84 {offsets = [5, 0], sizes = [1, 32], strides = [1, 1]} : vector<8x32xf32> to vector<1x32xf32>
    %378 = arith.addf %377, %376 : vector<1x32xf32>
    %379 = arith.negf %378 : vector<1x32xf32>
    %380 = math.exp %379 : vector<1x32xf32>
    %cst_71 = arith.constant 1.000000e+00 : f32
    %381 = vector.broadcast %cst_71 : f32 to vector<1x32xf32>
    %382 = arith.addf %381, %380 : vector<1x32xf32>
    %383 = arith.divf %381, %382 : vector<1x32xf32>
    %384 = math.tanh %378 : vector<1x32xf32>
    %385 = vector.extract_strided_slice %383 {offsets = [0, 0], sizes = [1, 8], strides = [1, 1]} : vector<1x32xf32> to vector<1x8xf32>
    %386 = vector.extract_strided_slice %383 {offsets = [0, 8], sizes = [1, 8], strides = [1, 1]} : vector<1x32xf32> to vector<1x8xf32>
    %387 = vector.extract_strided_slice %383 {offsets = [0, 24], sizes = [1, 8], strides = [1, 1]} : vector<1x32xf32> to vector<1x8xf32>
    %388 = vector.extract_strided_slice %384 {offsets = [0, 16], sizes = [1, 8], strides = [1, 1]} : vector<1x32xf32> to vector<1x8xf32>
    %389 = arith.mulf %386, %335 : vector<1x8xf32>
    %390 = arith.mulf %385, %388 : vector<1x8xf32>
    %391 = arith.addf %389, %390 : vector<1x8xf32>
    %392 = math.tanh %391 : vector<1x8xf32>
    %393 = arith.mulf %387, %392 : vector<1x8xf32>
    %394 = vector.broadcast %393 : vector<1x8xf32> to vector<8x8xf32>
    %395 = arith.mulf %394, %75 : vector<8x8xf32>
    %cst_72 = arith.constant dense<0.000000e+00> : vector<8xf32>
    %396 = vector.multi_reduction <add>, %395, %cst_72 [1] : vector<8x8xf32> to vector<8xf32>
    %397 = vector.shape_cast %396 : vector<8xf32> to vector<8x1xf32>
    %398 = vector.broadcast %397 : vector<8x1xf32> to vector<8x32xf32>
    %399 = arith.mulf %398, %69 : vector<8x32xf32>
    %400 = vector.broadcast %368 : vector<1x8xf32> to vector<8x8xf32>
    %401 = arith.mulf %400, %75 : vector<8x8xf32>
    %cst_73 = arith.constant dense<0.000000e+00> : vector<8xf32>
    %402 = vector.multi_reduction <add>, %401, %cst_73 [1] : vector<8x8xf32> to vector<8xf32>
    %403 = vector.shape_cast %402 : vector<8xf32> to vector<8x1xf32>
    %404 = vector.broadcast %403 : vector<8x1xf32> to vector<8x32xf32>
    %405 = arith.mulf %404, %70 : vector<8x32xf32>
    %406 = arith.addf %399, %405 : vector<8x32xf32>
    %cst_74 = arith.constant dense<0.000000e+00> : vector<32xf32>
    %407 = vector.multi_reduction <add>, %406, %cst_74 [0] : vector<8x32xf32> to vector<32xf32>
    %408 = vector.shape_cast %407 : vector<32xf32> to vector<1x32xf32>
    %409 = arith.addf %408, %64 : vector<1x32xf32>
    %410 = arith.negf %409 : vector<1x32xf32>
    %411 = math.exp %410 : vector<1x32xf32>
    %cst_75 = arith.constant 1.000000e+00 : f32
    %412 = vector.broadcast %cst_75 : f32 to vector<1x32xf32>
    %413 = arith.addf %412, %411 : vector<1x32xf32>
    %414 = arith.divf %412, %413 : vector<1x32xf32>
    %415 = math.tanh %409 : vector<1x32xf32>
    %416 = vector.extract_strided_slice %414 {offsets = [0, 0], sizes = [1, 8], strides = [1, 1]} : vector<1x32xf32> to vector<1x8xf32>
    %417 = vector.extract_strided_slice %414 {offsets = [0, 8], sizes = [1, 8], strides = [1, 1]} : vector<1x32xf32> to vector<1x8xf32>
    %418 = vector.extract_strided_slice %414 {offsets = [0, 24], sizes = [1, 8], strides = [1, 1]} : vector<1x32xf32> to vector<1x8xf32>
    %419 = vector.extract_strided_slice %415 {offsets = [0, 16], sizes = [1, 8], strides = [1, 1]} : vector<1x32xf32> to vector<1x8xf32>
    %420 = arith.mulf %417, %366 : vector<1x8xf32>
    %421 = arith.mulf %416, %419 : vector<1x8xf32>
    %422 = arith.addf %420, %421 : vector<1x8xf32>
    %423 = math.tanh %422 : vector<1x8xf32>
    %424 = arith.mulf %418, %423 : vector<1x8xf32>
    %425 = vector.broadcast %393 : vector<1x8xf32> to vector<8x8xf32>
    %426 = arith.mulf %425, %75 : vector<8x8xf32>
    %cst_76 = arith.constant dense<0.000000e+00> : vector<8xf32>
    %427 = vector.multi_reduction <add>, %426, %cst_76 [1] : vector<8x8xf32> to vector<8xf32>
    %428 = vector.shape_cast %427 : vector<8xf32> to vector<8x1xf32>
    %429 = vector.broadcast %428 : vector<8x1xf32> to vector<8x32xf32>
    %430 = arith.mulf %429, %68 : vector<8x32xf32>
    %cst_77 = arith.constant dense<0.000000e+00> : vector<32xf32>
    %431 = vector.multi_reduction <add>, %430, %cst_77 [0] : vector<8x32xf32> to vector<32xf32>
    %432 = vector.shape_cast %431 : vector<32xf32> to vector<1x32xf32>
    %433 = vector.extract_strided_slice %84 {offsets = [6, 0], sizes = [1, 32], strides = [1, 1]} : vector<8x32xf32> to vector<1x32xf32>
    %434 = arith.addf %433, %432 : vector<1x32xf32>
    %435 = arith.negf %434 : vector<1x32xf32>
    %436 = math.exp %435 : vector<1x32xf32>
    %cst_78 = arith.constant 1.000000e+00 : f32
    %437 = vector.broadcast %cst_78 : f32 to vector<1x32xf32>
    %438 = arith.addf %437, %436 : vector<1x32xf32>
    %439 = arith.divf %437, %438 : vector<1x32xf32>
    %440 = math.tanh %434 : vector<1x32xf32>
    %441 = vector.extract_strided_slice %439 {offsets = [0, 0], sizes = [1, 8], strides = [1, 1]} : vector<1x32xf32> to vector<1x8xf32>
    %442 = vector.extract_strided_slice %439 {offsets = [0, 8], sizes = [1, 8], strides = [1, 1]} : vector<1x32xf32> to vector<1x8xf32>
    %443 = vector.extract_strided_slice %439 {offsets = [0, 24], sizes = [1, 8], strides = [1, 1]} : vector<1x32xf32> to vector<1x8xf32>
    %444 = vector.extract_strided_slice %440 {offsets = [0, 16], sizes = [1, 8], strides = [1, 1]} : vector<1x32xf32> to vector<1x8xf32>
    %445 = arith.mulf %442, %391 : vector<1x8xf32>
    %446 = arith.mulf %441, %444 : vector<1x8xf32>
    %447 = arith.addf %445, %446 : vector<1x8xf32>
    %448 = math.tanh %447 : vector<1x8xf32>
    %449 = arith.mulf %443, %448 : vector<1x8xf32>
    %450 = vector.broadcast %449 : vector<1x8xf32> to vector<8x8xf32>
    %451 = arith.mulf %450, %75 : vector<8x8xf32>
    %cst_79 = arith.constant dense<0.000000e+00> : vector<8xf32>
    %452 = vector.multi_reduction <add>, %451, %cst_79 [1] : vector<8x8xf32> to vector<8xf32>
    %453 = vector.shape_cast %452 : vector<8xf32> to vector<8x1xf32>
    %454 = vector.broadcast %453 : vector<8x1xf32> to vector<8x32xf32>
    %455 = arith.mulf %454, %69 : vector<8x32xf32>
    %456 = vector.broadcast %424 : vector<1x8xf32> to vector<8x8xf32>
    %457 = arith.mulf %456, %75 : vector<8x8xf32>
    %cst_80 = arith.constant dense<0.000000e+00> : vector<8xf32>
    %458 = vector.multi_reduction <add>, %457, %cst_80 [1] : vector<8x8xf32> to vector<8xf32>
    %459 = vector.shape_cast %458 : vector<8xf32> to vector<8x1xf32>
    %460 = vector.broadcast %459 : vector<8x1xf32> to vector<8x32xf32>
    %461 = arith.mulf %460, %70 : vector<8x32xf32>
    %462 = arith.addf %455, %461 : vector<8x32xf32>
    %cst_81 = arith.constant dense<0.000000e+00> : vector<32xf32>
    %463 = vector.multi_reduction <add>, %462, %cst_81 [0] : vector<8x32xf32> to vector<32xf32>
    %464 = vector.shape_cast %463 : vector<32xf32> to vector<1x32xf32>
    %465 = arith.addf %464, %64 : vector<1x32xf32>
    %466 = arith.negf %465 : vector<1x32xf32>
    %467 = math.exp %466 : vector<1x32xf32>
    %cst_82 = arith.constant 1.000000e+00 : f32
    %468 = vector.broadcast %cst_82 : f32 to vector<1x32xf32>
    %469 = arith.addf %468, %467 : vector<1x32xf32>
    %470 = arith.divf %468, %469 : vector<1x32xf32>
    %471 = math.tanh %465 : vector<1x32xf32>
    %472 = vector.extract_strided_slice %470 {offsets = [0, 0], sizes = [1, 8], strides = [1, 1]} : vector<1x32xf32> to vector<1x8xf32>
    %473 = vector.extract_strided_slice %470 {offsets = [0, 8], sizes = [1, 8], strides = [1, 1]} : vector<1x32xf32> to vector<1x8xf32>
    %474 = vector.extract_strided_slice %470 {offsets = [0, 24], sizes = [1, 8], strides = [1, 1]} : vector<1x32xf32> to vector<1x8xf32>
    %475 = vector.extract_strided_slice %471 {offsets = [0, 16], sizes = [1, 8], strides = [1, 1]} : vector<1x32xf32> to vector<1x8xf32>
    %476 = arith.mulf %473, %422 : vector<1x8xf32>
    %477 = arith.mulf %472, %475 : vector<1x8xf32>
    %478 = arith.addf %476, %477 : vector<1x8xf32>
    %479 = math.tanh %478 : vector<1x8xf32>
    %480 = arith.mulf %474, %479 : vector<1x8xf32>
    %481 = vector.broadcast %449 : vector<1x8xf32> to vector<8x8xf32>
    %482 = arith.mulf %481, %75 : vector<8x8xf32>
    %cst_83 = arith.constant dense<0.000000e+00> : vector<8xf32>
    %483 = vector.multi_reduction <add>, %482, %cst_83 [1] : vector<8x8xf32> to vector<8xf32>
    %484 = vector.shape_cast %483 : vector<8xf32> to vector<8x1xf32>
    %485 = vector.broadcast %484 : vector<8x1xf32> to vector<8x32xf32>
    %486 = arith.mulf %485, %68 : vector<8x32xf32>
    %cst_84 = arith.constant dense<0.000000e+00> : vector<32xf32>
    %487 = vector.multi_reduction <add>, %486, %cst_84 [0] : vector<8x32xf32> to vector<32xf32>
    %488 = vector.shape_cast %487 : vector<32xf32> to vector<1x32xf32>
    %489 = vector.extract_strided_slice %84 {offsets = [7, 0], sizes = [1, 32], strides = [1, 1]} : vector<8x32xf32> to vector<1x32xf32>
    %490 = arith.addf %489, %488 : vector<1x32xf32>
    %491 = arith.negf %490 : vector<1x32xf32>
    %492 = math.exp %491 : vector<1x32xf32>
    %cst_85 = arith.constant 1.000000e+00 : f32
    %493 = vector.broadcast %cst_85 : f32 to vector<1x32xf32>
    %494 = arith.addf %493, %492 : vector<1x32xf32>
    %495 = arith.divf %493, %494 : vector<1x32xf32>
    %496 = math.tanh %490 : vector<1x32xf32>
    %497 = vector.extract_strided_slice %495 {offsets = [0, 0], sizes = [1, 8], strides = [1, 1]} : vector<1x32xf32> to vector<1x8xf32>
    %498 = vector.extract_strided_slice %495 {offsets = [0, 8], sizes = [1, 8], strides = [1, 1]} : vector<1x32xf32> to vector<1x8xf32>
    %499 = vector.extract_strided_slice %495 {offsets = [0, 24], sizes = [1, 8], strides = [1, 1]} : vector<1x32xf32> to vector<1x8xf32>
    %500 = vector.extract_strided_slice %496 {offsets = [0, 16], sizes = [1, 8], strides = [1, 1]} : vector<1x32xf32> to vector<1x8xf32>
    %501 = arith.mulf %498, %447 : vector<1x8xf32>
    %502 = arith.mulf %497, %500 : vector<1x8xf32>
    %503 = arith.addf %501, %502 : vector<1x8xf32>
    %504 = math.tanh %503 : vector<1x8xf32>
    %505 = arith.mulf %499, %504 : vector<1x8xf32>
    %506 = vector.broadcast %505 : vector<1x8xf32> to vector<8x8xf32>
    %507 = arith.mulf %506, %75 : vector<8x8xf32>
    %cst_86 = arith.constant dense<0.000000e+00> : vector<8xf32>
    %508 = vector.multi_reduction <add>, %507, %cst_86 [1] : vector<8x8xf32> to vector<8xf32>
    %509 = vector.shape_cast %508 : vector<8xf32> to vector<8x1xf32>
    %510 = vector.broadcast %509 : vector<8x1xf32> to vector<8x32xf32>
    %511 = arith.mulf %510, %69 : vector<8x32xf32>
    %512 = vector.broadcast %480 : vector<1x8xf32> to vector<8x8xf32>
    %513 = arith.mulf %512, %75 : vector<8x8xf32>
    %cst_87 = arith.constant dense<0.000000e+00> : vector<8xf32>
    %514 = vector.multi_reduction <add>, %513, %cst_87 [1] : vector<8x8xf32> to vector<8xf32>
    %515 = vector.shape_cast %514 : vector<8xf32> to vector<8x1xf32>
    %516 = vector.broadcast %515 : vector<8x1xf32> to vector<8x32xf32>
    %517 = arith.mulf %516, %70 : vector<8x32xf32>
    %518 = arith.addf %511, %517 : vector<8x32xf32>
    %cst_88 = arith.constant dense<0.000000e+00> : vector<32xf32>
    %519 = vector.multi_reduction <add>, %518, %cst_88 [0] : vector<8x32xf32> to vector<32xf32>
    %520 = vector.shape_cast %519 : vector<32xf32> to vector<1x32xf32>
    %521 = arith.addf %520, %64 : vector<1x32xf32>
    %522 = arith.negf %521 : vector<1x32xf32>
    %523 = math.exp %522 : vector<1x32xf32>
    %cst_89 = arith.constant 1.000000e+00 : f32
    %524 = vector.broadcast %cst_89 : f32 to vector<1x32xf32>
    %525 = arith.addf %524, %523 : vector<1x32xf32>
    %526 = arith.divf %524, %525 : vector<1x32xf32>
    %527 = math.tanh %521 : vector<1x32xf32>
    %528 = vector.extract_strided_slice %526 {offsets = [0, 0], sizes = [1, 8], strides = [1, 1]} : vector<1x32xf32> to vector<1x8xf32>
    %529 = vector.extract_strided_slice %526 {offsets = [0, 8], sizes = [1, 8], strides = [1, 1]} : vector<1x32xf32> to vector<1x8xf32>
    %530 = vector.extract_strided_slice %526 {offsets = [0, 24], sizes = [1, 8], strides = [1, 1]} : vector<1x32xf32> to vector<1x8xf32>
    %531 = vector.extract_strided_slice %527 {offsets = [0, 16], sizes = [1, 8], strides = [1, 1]} : vector<1x32xf32> to vector<1x8xf32>
    %532 = arith.mulf %529, %478 : vector<1x8xf32>
    %533 = arith.mulf %528, %531 : vector<1x8xf32>
    %534 = arith.addf %532, %533 : vector<1x8xf32>
    %535 = math.tanh %534 : vector<1x8xf32>
    %536 = arith.mulf %530, %535 : vector<1x8xf32>
    %c8 = arith.constant 8 : index
    %c0_90 = arith.constant 0 : index
    %537 = vector.load %arg3[%c8, %c0_90] : memref<24x512xbf16, #tpu.memory_space<vmem>>, vector<8x512xbf16>
    %c16 = arith.constant 16 : index
    %c0_91 = arith.constant 0 : index
    %538 = vector.load %arg3[%c16, %c0_91] : memref<24x512xbf16, #tpu.memory_space<vmem>>, vector<1x512xbf16>
    %539 = vector.broadcast %536 : vector<1x8xf32> to vector<8x8xf32>
    %540 = arith.mulf %539, %75 : vector<8x8xf32>
    %cst_92 = arith.constant dense<0.000000e+00> : vector<8xf32>
    %541 = vector.multi_reduction <add>, %540, %cst_92 [1] : vector<8x8xf32> to vector<8xf32>
    %542 = vector.shape_cast %541 : vector<8xf32> to vector<8x1xf32>
    %543 = arith.extf %537 : vector<8x512xbf16> to vector<8x512xf32>
    %544 = vector.broadcast %542 : vector<8x1xf32> to vector<8x512xf32>
    %545 = arith.mulf %544, %543 : vector<8x512xf32>
    %cst_93 = arith.constant dense<0.000000e+00> : vector<512xf32>
    %546 = vector.multi_reduction <add>, %545, %cst_93 [0] : vector<8x512xf32> to vector<512xf32>
    %547 = vector.shape_cast %546 : vector<512xf32> to vector<1x512xf32>
    %548 = vector.broadcast %547 : vector<1x512xf32> to vector<8x512xf32>
    %549 = arith.addf %3, %548 : vector<8x512xf32>
    %550 = arith.extf %538 : vector<1x512xbf16> to vector<1x512xf32>
    %551 = vector.broadcast %550 : vector<1x512xf32> to vector<8x512xf32>
    %552 = arith.addf %549, %551 : vector<8x512xf32>
    %553 = math.tanh %552 : vector<8x512xf32>
    %554 = arith.truncf %553 : vector<8x512xf32> to vector<8x512xbf16>
    %c0_94 = arith.constant 0 : index
    %c0_95 = arith.constant 0 : index
    %555 = vector.load %arg4[%c0_94, %c0_95] : memref<512x8xbf16, #tpu.memory_space<vmem>>, vector<512x8xbf16>
    %cst_96 = arith.constant dense<0.000000e+00> : vector<8x8xf32>
    %556 = tpu.matmul %554, %555, %cst_96 {dimension_numbers = #tpu.dot_dimension_numbers<[1], [0], [0], [1], [0, 0, 1, 1], [], []>} : vector<8x512xbf16>, vector<512x8xbf16>, vector<8x8xf32> -> vector<8x8xf32>
    %557 = vector.broadcast %65 : vector<1x8xf32> to vector<8x8xf32>
    %558 = arith.addf %556, %557 : vector<8x8xf32>
    %559 = math.tanh %558 : vector<8x8xf32>
    %c56 = arith.constant 56 : index
    %c0_97 = arith.constant 0 : index
    %560 = vector.load %arg2[%c56, %c0_97] : memref<64x32xf32, #tpu.memory_space<vmem>>, vector<8x32xf32>
    %561 = vector.extract_strided_slice %560 {offsets = [0, 0], sizes = [8, 16], strides = [1, 1]} : vector<8x32xf32> to vector<8x16xf32>
    %cst_98 = arith.constant dense<0.000000e+00> : vector<8x16xf32>
    %562 = tpu.matmul %559, %561, %cst_98 {dimension_numbers = #tpu.dot_dimension_numbers<[1], [0], [0], [1], [0, 0, 1, 1], [], []>} : vector<8x8xf32>, vector<8x16xf32>, vector<8x16xf32> -> vector<8x16xf32>
    %563 = vector.broadcast %66 : vector<1x16xf32> to vector<8x16xf32>
    %564 = arith.addf %562, %563 : vector<8x16xf32>
    %c0_99 = arith.constant 0 : index
    %c0_100 = arith.constant 0 : index
    %565 = vector.load %arg5[%c0_99, %c0_100] : memref<8x32xf32, #tpu.memory_space<vmem>>, vector<8x16xf32>
    tpu.vector_store %arg5[%c0_99, %c0_100], %564 {strides = array<i32>} : memref<8x32xf32, #tpu.memory_space<vmem>>, vector<8x16xf32>,
    %c0_101 = arith.constant 0 : index
    %c0_102 = arith.constant 0 : index
    %566 = vector.load %arg1[%c0_101, %c0_102] : memref<8x16xf32, #tpu.memory_space<vmem>>, vector<8x16xf32>
    %567 = vector.broadcast %67 : vector<1x16xf32> to vector<8x16xf32>
    %568 = arith.mulf %567, %566 : vector<8x16xf32>
    %569 = arith.addf %564, %568 : vector<8x16xf32>
    %c0_103 = arith.constant 0 : index
    %c16_104 = arith.constant 16 : index
    %570 = vector.load %arg5[%c0_103, %c16_104] : memref<8x32xf32, #tpu.memory_space<vmem>>, vector<8x16xf32>
    tpu.vector_store %arg5[%c0_103, %c16_104], %569 {strides = array<i32>} : memref<8x32xf32, #tpu.memory_space<vmem>>, vector<8x16xf32>,
    return
  }
}

</mosaic_0001>

<llo_original>
// kernel: generator_forward.1
$region0: #{generator_forward.1}
  #allocation0 [shape = 'u32[]', space=smem, size = 0x4, offset = 0x4, fixed_abs, tag = 'smem constant byte address 0x4 - core index']
  #allocation1 [shape = 'u32[144,128]{1,0:T(1,128)}', space=vmem, size = 0x12000, scoped, tag = 'internal scratch']
  #allocation2 [shape = 'f32[14,4]{1,0:T(8,128)}', space=vmem, size = 0x2000, scoped, tag = 'scratch operand']
  %s0 = inlined_call_operand.vmem [shape: f32[8,4], index: 0, kind: input, shape index: {}]
  %s1 = inlined_call_operand.vmem [shape: f32[8,16], index: 1, kind: input, shape index: {}]
  %s2 = inlined_call_operand.vmem [shape: f32[64,32], index: 2, kind: input, shape index: {}]
  %s3 = inlined_call_operand.vmem [shape: bf16[24,512], index: 3, kind: input, shape index: {}]
  %s4 = inlined_call_operand.vmem [shape: bf16[512,8], index: 4, kind: input, shape index: {}]
  %s5 = inlined_call_operand.vmem [shape: f32[8,32], index: 5, kind: output, shape index: {}]
  %s6 = sld [smem:[#allocation0]]
  $region30: #{generator_forward.1} parent=0
    _
  %s8 = ssub.s32 1, %s6
  %s9 = scalar_select 0, %s8, %s6
  // Predicated region
  $region2: #{generator_forward.1} parent=0 // pred_check
    _
  $region3: #{generator_forward.1} parent=0 // pred_check_branch
    %11 = sbr.rel (0) target = $region5
  $region4: #{generator_forward.1} parent=0 // pred_region
    _
  $region5: #{generator_forward.1} parent=0 // pred_fallthru
    _
  // Predicated region
  $region6: #{generator_forward.1} parent=0 // pred_check
    _
  $region7: #{generator_forward.1} parent=0 // pred_check_branch
    %13 = sbr.rel (0) target = $region9
  $region8: #{generator_forward.1} parent=0 // pred_region
    _
  $region9: #{generator_forward.1} parent=0 // pred_fallthru
    _
  // Predicated region
  $region10: #{generator_forward.1} parent=0 // pred_check
    _
  $region11: #{generator_forward.1} parent=0 // pred_check_branch
    %15 = sbr.rel (0) target = $region13
  $region12: #{generator_forward.1} parent=0 // pred_region
    _
  $region13: #{generator_forward.1} parent=0 // pred_fallthru
    _
  // Predicated region
  $region14: #{generator_forward.1} parent=0 // pred_check
    _
  $region15: #{generator_forward.1} parent=0 // pred_check_branch
    %17 = sbr.rel (0) target = $region17
  $region16: #{generator_forward.1} parent=0 // pred_region
    _
  $region17: #{generator_forward.1} parent=0 // pred_fallthru
    _
  // Predicated region
  $region18: #{generator_forward.1} parent=0 // pred_check
    _
  $region19: #{generator_forward.1} parent=0 // pred_check_branch
    %19 = sbr.rel (0) target = $region21
  $region20: #{generator_forward.1} parent=0 // pred_region
    _
  $region21: #{generator_forward.1} parent=0 // pred_fallthru
    _
  %v21 = vld [vmem:[%s0] sm:$0xff]
  %v22 = vld [vmem:[%s3] sm:$0x33]
  %v23 = vld [vmem:[%s3 + $0x8] sm:$0x33]
  %v24 = vpack.c.bf16 %v21, %v21
  %vm25 = vcmask 31744
  %26 = vst.msk [vmem:[#allocation2] sm:$0xff] %vm25, 0.0
  %vm27 = vcmask 29696
  %28 = vst.msk [vmem:[#allocation2 + $0x8] sm:$0x3f] %vm27, 0.0
  %29 = vst.msk [vmem:[#allocation2 + $0x3] sm:$0xff] %vm25, %v21
  %v30 = vld [vmem:[#allocation2] sm:$0xff]
  %v31 = vld [vmem:[#allocation2 + $0x8] sm:$0x3f]
  %v32 = vld [vmem:[%s2] sm:$0xff]
  %v33 = vld [vmem:[%s2 + $0x8] sm:$0xff]
  %v34 = vld [vmem:[%s2 + $0x10] sm:$0xff]
  %vm37 = vcmask 1046528
  %v38 = vrot.slane %v30, 1
  %v39 = vrot.slane %v31, 1
  %v40 = vsel %vm37, %v38, %v39
  %v42 = vrot.slane %v32, 4
  %v43 = vsel %vm25, %v40, 0
  %v45 = vsel %vm25, %v39, 0
  %vm47 = vcmask 1043456
  %v48 = vsel %vm47, %v42, 0
  %50 = vmatprep.subr.mxu0 0.0
  %51 = vmatpush1.msra.mxu0 %v48
  %52 = vmatprep.subr.mxu0 0.0
  %53 = vmatpush1.msra.mxu0 0.0
  %54 = vmatprep.subr.mxu0 0.0
  %55 = vmatpush1.msra.mxu0 0.0
  %56 = vmatprep.subr.mxu0 0.0
  %57 = vmatpush1.msra.mxu0 0.0
  %58 = vmatprep.subr.mxu0 0.0
  %59 = vmatpush1.msra.mxu0 0.0
  %60 = vmatprep.subr.mxu0 0.0
  %61 = vmatpush1.msra.mxu0 0.0
  %62 = vmatprep.subr.mxu0 0.0
  %63 = vmatpush1.msra.mxu0 0.0
  %64 = vmatprep.subr.mxu0 0.0
  %65 = vmatpush1.msra.mxu0 0.0
  %66 = vmatprep.subr.mxu0 0.0
  %67 = vmatpush1.msra.mxu0 0.0
  %68 = vmatprep.subr.mxu0 0.0
  %69 = vmatpush1.msra.mxu0 0.0
  %70 = vmatprep.subr.mxu0 0.0
  %71 = vmatpush1.msra.mxu0 0.0
  %72 = vmatprep.subr.mxu0 0.0
  %73 = vmatpush1.msra.mxu0 0.0
  %74 = vmatprep.subr.mxu0 0.0
  %75 = vmatpush1.msra.mxu0 0.0
  %76 = vmatprep.subr.mxu0 0.0
  %77 = vmatpush1.msra.mxu0 0.0
  %78 = vmatprep.subr.mxu0 0.0
  %79 = vmatpush1.msra.mxu0 0.0
  %80 = vmatprep.subr.mxu0 0.0
  %81 = vmatpush1.msra.mxu0 0.0
  %82 = vmatprep.subr.mxu0 0.0
  %83 = vmatpush1.msra.mxu0 0.0
  %84 = vmatprep.subr.mxu0 0.0
  %85 = vmatpush1.msra.mxu0 0.0
  %86 = vmatprep.subr.mxu0 0.0
  %87 = vmatpush1.msra.mxu0 0.0
  %88 = vmatprep.subr.mxu0 0.0
  %89 = vmatpush1.msra.mxu0 0.0
  %90 = vmatprep.subr.mxu0 0.0
  %91 = vmatpush1.msra.mxu0 0.0
  %92 = vmatprep.subr.mxu0 0.0
  %93 = vmatpush1.msra.mxu0 0.0
  %94 = vmatprep.subr.mxu0 0.0
  %95 = vmatpush1.msra.mxu0 0.0
  %96 = vmatprep.subr.mxu0 0.0
  %97 = vmatpush1.msra.mxu0 0.0
  %98 = vmatprep.subr.mxu0 0.0
  %99 = vmatpush1.msra.mxu0 0.0
  %100 = vmatprep.subr.mxu0 0.0
  %101 = vmatpush1.msra.mxu0 0.0
  %102 = vmatprep.subr.mxu0 0.0
  %103 = vmatpush1.msra.mxu0 0.0
  %104 = vmatprep.subr.mxu0 0.0
  %105 = vmatpush1.msra.mxu0 0.0
  %106 = vmatprep.subr.mxu0 0.0
  %107 = vmatpush1.msra.mxu0 0.0
  %108 = vmatprep.subr.mxu0 0.0
  %109 = vmatpush1.msra.mxu0 0.0
  %110 = vmatprep.subr.mxu0 0.0
  %111 = vmatpush1.msra.mxu0 0.0
  %112 = vmatprep.subr.mxu0 0.0
  %113 = vmatpush1.msra.mxu0 0.0
  %114 = vmatprep.mubr.f32.mxu0 0.0
  %115 = vmatmul.mubr.f32.gmra.mrb[0].mxu0 %v43
  %v116 = vpop.f32.mrb[0].mxu0
  %v117 = vadd.f32 0.0, %v116
  %v118 = vpop.f32.mrb[0].mxu0
  %119 = vmatprep.mubr.f32.mxu0 0.0
  %120 = vmatmul.mubr.f32.gmra.mrb[0].mxu0 %v45
  %v121 = vpop.f32.mrb[0].mxu0
  %v122 = vadd.f32 0.0, %v121
  %v123 = vpop.f32.mrb[0].mxu0
  %124 = vdwg.mxu0
  %vm125 = vcmask 1044480
  %v126 = vrot.slane %v30, 3
  %v127 = vrot.slane %v31, 3
  %v128 = vsel %vm125, %v126, %v127
  %v130 = vrot.slane %v33, 4
  %v131 = vsel %vm25, %v128, 0
  %v133 = vsel %vm25, %v127, 0
  %v135 = vsel %vm47, %v130, 0
  %137 = vmatprep.subr.mxu0 0.0
  %138 = vmatpush1.msra.mxu0 %v135
  %139 = vmatprep.subr.mxu0 0.0
  %140 = vmatpush1.msra.mxu0 0.0
  %141 = vmatprep.subr.mxu0 0.0
  %142 = vmatpush1.msra.mxu0 0.0
  %143 = vmatprep.subr.mxu0 0.0
  %144 = vmatpush1.msra.mxu0 0.0
  %145 = vmatprep.subr.mxu0 0.0
  %146 = vmatpush1.msra.mxu0 0.0
  %147 = vmatprep.subr.mxu0 0.0
  %148 = vmatpush1.msra.mxu0 0.0
  %149 = vmatprep.subr.mxu0 0.0
  %150 = vmatpush1.msra.mxu0 0.0
  %151 = vmatprep.subr.mxu0 0.0
  %152 = vmatpush1.msra.mxu0 0.0
  %153 = vmatprep.subr.mxu0 0.0
  %154 = vmatpush1.msra.mxu0 0.0
  %155 = vmatprep.subr.mxu0 0.0
  %156 = vmatpush1.msra.mxu0 0.0
  %157 = vmatprep.subr.mxu0 0.0
  %158 = vmatpush1.msra.mxu0 0.0
  %159 = vmatprep.subr.mxu0 0.0
  %160 = vmatpush1.msra.mxu0 0.0
  %161 = vmatprep.subr.mxu0 0.0
  %162 = vmatpush1.msra.mxu0 0.0
  %163 = vmatprep.subr.mxu0 0.0
  %164 = vmatpush1.msra.mxu0 0.0
  %165 = vmatprep.subr.mxu0 0.0
  %166 = vmatpush1.msra.mxu0 0.0
  %167 = vmatprep.subr.mxu0 0.0
  %168 = vmatpush1.msra.mxu0 0.0
  %169 = vmatprep.subr.mxu0 0.0
  %170 = vmatpush1.msra.mxu0 0.0
  %171 = vmatprep.subr.mxu0 0.0
  %172 = vmatpush1.msra.mxu0 0.0
  %173 = vmatprep.subr.mxu0 0.0
  %174 = vmatpush1.msra.mxu0 0.0
  %175 = vmatprep.subr.mxu0 0.0
  %176 = vmatpush1.msra.mxu0 0.0
  %177 = vmatprep.subr.mxu0 0.0
  %178 = vmatpush1.msra.mxu0 0.0
  %179 = vmatprep.subr.mxu0 0.0
  %180 = vmatpush1.msra.mxu0 0.0
  %181 = vmatprep.subr.mxu0 0.0
  %182 = vmatpush1.msra.mxu0 0.0
  %183 = vmatprep.subr.mxu0 0.0
  %184 = vmatpush1.msra.mxu0 0.0
  %185 = vmatprep.subr.mxu0 0.0
  %186 = vmatpush1.msra.mxu0 0.0
  %187 = vmatprep.subr.mxu0 0.0
  %188 = vmatpush1.msra.mxu0 0.0
  %189 = vmatprep.subr.mxu0 0.0
  %190 = vmatpush1.msra.mxu0 0.0
  %191 = vmatprep.subr.mxu0 0.0
  %192 = vmatpush1.msra.mxu0 0.0
  %193 = vmatprep.subr.mxu0 0.0
  %194 = vmatpush1.msra.mxu0 0.0
  %195 = vmatprep.subr.mxu0 0.0
  %196 = vmatpush1.msra.mxu0 0.0
  %197 = vmatprep.subr.mxu0 0.0
  %198 = vmatpush1.msra.mxu0 0.0
  %199 = vmatprep.subr.mxu0 0.0
  %200 = vmatpush1.msra.mxu0 0.0
  %201 = vmatprep.mubr.f32.mxu0 0.0
  %202 = vmatmul.mubr.f32.gmra.mrb[0].mxu0 %v131
  %v203 = vpop.f32.mrb[0].mxu0
  %v204 = vadd.f32 0.0, %v203
  %v205 = vpop.f32.mrb[0].mxu0
  %206 = vmatprep.mubr.f32.mxu0 0.0
  %207 = vmatmul.mubr.f32.gmra.mrb[0].mxu0 %v133
  %v208 = vpop.f32.mrb[0].mxu0
  %v209 = vadd.f32 0.0, %v208
  %v210 = vpop.f32.mrb[0].mxu0
  %211 = vdwg.mxu0
  %v212 = vrot.slane %v30, 4
  %v213 = vrot.slane %v31, 4
  %v214 = vsel %vm47, %v212, %v213
  %v215 = vsel %vm25, %v214, 0
  %v217 = vsel %vm25, %v213, 0
  %v220 = vsel %vm47, %v34, 0
  %222 = vmatprep.subr.mxu0 0.0
  %223 = vmatpush1.msra.mxu0 %v220
  %224 = vmatprep.subr.mxu0 0.0
  %225 = vmatpush1.msra.mxu0 0.0
  %226 = vmatprep.subr.mxu0 0.0
  %227 = vmatpush1.msra.mxu0 0.0
  %228 = vmatprep.subr.mxu0 0.0
  %229 = vmatpush1.msra.mxu0 0.0
  %230 = vmatprep.subr.mxu0 0.0
  %231 = vmatpush1.msra.mxu0 0.0
  %232 = vmatprep.subr.mxu0 0.0
  %233 = vmatpush1.msra.mxu0 0.0
  %234 = vmatprep.subr.mxu0 0.0
  %235 = vmatpush1.msra.mxu0 0.0
  %236 = vmatprep.subr.mxu0 0.0
  %237 = vmatpush1.msra.mxu0 0.0
  %238 = vmatprep.subr.mxu0 0.0
  %239 = vmatpush1.msra.mxu0 0.0
  %240 = vmatprep.subr.mxu0 0.0
  %241 = vmatpush1.msra.mxu0 0.0
  %242 = vmatprep.subr.mxu0 0.0
  %243 = vmatpush1.msra.mxu0 0.0
  %244 = vmatprep.subr.mxu0 0.0
  %245 = vmatpush1.msra.mxu0 0.0
  %246 = vmatprep.subr.mxu0 0.0
  %247 = vmatpush1.msra.mxu0 0.0
  %248 = vmatprep.subr.mxu0 0.0
  %249 = vmatpush1.msra.mxu0 0.0
  %250 = vmatprep.subr.mxu0 0.0
  %251 = vmatpush1.msra.mxu0 0.0
  %252 = vmatprep.subr.mxu0 0.0
  %253 = vmatpush1.msra.mxu0 0.0
  %254 = vmatprep.subr.mxu0 0.0
  %255 = vmatpush1.msra.mxu0 0.0
  %256 = vmatprep.subr.mxu0 0.0
  %257 = vmatpush1.msra.mxu0 0.0
  %258 = vmatprep.subr.mxu0 0.0
  %259 = vmatpush1.msra.mxu0 0.0
  %260 = vmatprep.subr.mxu0 0.0
  %261 = vmatpush1.msra.mxu0 0.0
  %262 = vmatprep.subr.mxu0 0.0
  %263 = vmatpush1.msra.mxu0 0.0
  %264 = vmatprep.subr.mxu0 0.0
  %265 = vmatpush1.msra.mxu0 0.0
  %266 = vmatprep.subr.mxu0 0.0
  %267 = vmatpush1.msra.mxu0 0.0
  %268 = vmatprep.subr.mxu0 0.0
  %269 = vmatpush1.msra.mxu0 0.0
  %270 = vmatprep.subr.mxu0 0.0
  %271 = vmatpush1.msra.mxu0 0.0
  %272 = vmatprep.subr.mxu0 0.0
  %273 = vmatpush1.msra.mxu0 0.0
  %274 = vmatprep.subr.mxu0 0.0
  %275 = vmatpush1.msra.mxu0 0.0
  %276 = vmatprep.subr.mxu0 0.0
  %277 = vmatpush1.msra.mxu0 0.0
  %278 = vmatprep.subr.mxu0 0.0
  %279 = vmatpush1.msra.mxu0 0.0
  %280 = vmatprep.subr.mxu0 0.0
  %281 = vmatpush1.msra.mxu0 0.0
  %282 = vmatprep.subr.mxu0 0.0
  %283 = vmatpush1.msra.mxu0 0.0
  %284 = vmatprep.subr.mxu0 0.0
  %285 = vmatpush1.msra.mxu0 0.0
  %286 = vmatprep.mubr.f32.mxu0 0.0
  %287 = vmatmul.mubr.f32.gmra.mrb[0].mxu0 %v215
  %v288 = vpop.f32.mrb[0].mxu0
  %v289 = vadd.f32 0.0, %v288
  %v290 = vpop.f32.mrb[0].mxu0
  %291 = vmatprep.mubr.f32.mxu0 0.0
  %292 = vmatmul.mubr.f32.gmra.mrb[0].mxu0 %v217
  %v293 = vpop.f32.mrb[0].mxu0
  %v294 = vadd.f32 0.0, %v293
  %v295 = vpop.f32.mrb[0].mxu0
  %296 = vdwg.mxu0
  %v297 = vsel %vm25, %v30, 0
  %v299 = vsel %vm25, %v31, 0
  %v301 = vsel %vm47, %v32, 0
  %303 = vmatprep.subr.mxu0 0.0
  %304 = vmatpush1.msra.mxu0 %v301
  %305 = vmatprep.subr.mxu0 0.0
  %306 = vmatpush1.msra.mxu0 0.0
  %307 = vmatprep.subr.mxu0 0.0
  %308 = vmatpush1.msra.mxu0 0.0
  %309 = vmatprep.subr.mxu0 0.0
  %310 = vmatpush1.msra.mxu0 0.0
  %311 = vmatprep.subr.mxu0 0.0
  %312 = vmatpush1.msra.mxu0 0.0
  %313 = vmatprep.subr.mxu0 0.0
  %314 = vmatpush1.msra.mxu0 0.0
  %315 = vmatprep.subr.mxu0 0.0
  %316 = vmatpush1.msra.mxu0 0.0
  %317 = vmatprep.subr.mxu0 0.0
  %318 = vmatpush1.msra.mxu0 0.0
  %319 = vmatprep.subr.mxu0 0.0
  %320 = vmatpush1.msra.mxu0 0.0
  %321 = vmatprep.subr.mxu0 0.0
  %322 = vmatpush1.msra.mxu0 0.0
  %323 = vmatprep.subr.mxu0 0.0
  %324 = vmatpush1.msra.mxu0 0.0
  %325 = vmatprep.subr.mxu0 0.0
  %326 = vmatpush1.msra.mxu0 0.0
  %327 = vmatprep.subr.mxu0 0.0
  %328 = vmatpush1.msra.mxu0 0.0
  %329 = vmatprep.subr.mxu0 0.0
  %330 = vmatpush1.msra.mxu0 0.0
  %331 = vmatprep.subr.mxu0 0.0
  %332 = vmatpush1.msra.mxu0 0.0
  %333 = vmatprep.subr.mxu0 0.0
  %334 = vmatpush1.msra.mxu0 0.0
  %335 = vmatprep.subr.mxu0 0.0
  %336 = vmatpush1.msra.mxu0 0.0
  %337 = vmatprep.subr.mxu0 0.0
  %338 = vmatpush1.msra.mxu0 0.0
  %339 = vmatprep.subr.mxu0 0.0
  %340 = vmatpush1.msra.mxu0 0.0
  %341 = vmatprep.subr.mxu0 0.0
  %342 = vmatpush1.msra.mxu0 0.0
  %343 = vmatprep.subr.mxu0 0.0
  %344 = vmatpush1.msra.mxu0 0.0
  %345 = vmatprep.subr.mxu0 0.0
  %346 = vmatpush1.msra.mxu0 0.0
  %347 = vmatprep.subr.mxu0 0.0
  %348 = vmatpush1.msra.mxu0 0.0
  %349 = vmatprep.subr.mxu0 0.0
  %350 = vmatpush1.msra.mxu0 0.0
  %351 = vmatprep.subr.mxu0 0.0
  %352 = vmatpush1.msra.mxu0 0.0
  %353 = vmatprep.subr.mxu0 0.0
  %354 = vmatpush1.msra.mxu0 0.0
  %355 = vmatprep.subr.mxu0 0.0
  %356 = vmatpush1.msra.mxu0 0.0
  %357 = vmatprep.subr.mxu0 0.0
  %358 = vmatpush1.msra.mxu0 0.0
  %359 = vmatprep.subr.mxu0 0.0
  %360 = vmatpush1.msra.mxu0 0.0
  %361 = vmatprep.subr.mxu0 0.0
  %362 = vmatpush1.msra.mxu0 0.0
  %363 = vmatprep.subr.mxu0 0.0
  %364 = vmatpush1.msra.mxu0 0.0
  %365 = vmatprep.subr.mxu0 0.0
  %366 = vmatpush1.msra.mxu0 0.0
  %367 = vmatprep.mubr.f32.mxu0 0.0
  %368 = vmatmul.mubr.f32.gmra.mrb[0].mxu0 %v297
  %v369 = vpop.f32.mrb[0].mxu0
  %v370 = vadd.f32 %v117, %v369
  %v371 = vpop.f32.mrb[0].mxu0
  %372 = vmatprep.mubr.f32.mxu0 0.0
  %373 = vmatmul.mubr.f32.gmra.mrb[0].mxu0 %v299
  %v374 = vpop.f32.mrb[0].mxu0
  %v375 = vadd.f32 %v122, %v374
  %v376 = vpop.f32.mrb[0].mxu0
  %377 = vdwg.mxu0
  %vm378 = vcmask 1045504
  %v379 = vrot.slane %v30, 2
  %v380 = vrot.slane %v31, 2
  %v381 = vsel %vm378, %v379, %v380
  %v382 = vsel %vm25, %v381, 0
  %v384 = vsel %vm25, %v380, 0
  %v386 = vsel %vm47, %v33, 0
  %388 = vmatprep.subr.mxu0 0.0
  %389 = vmatpush1.msra.mxu0 %v386
  %390 = vmatprep.subr.mxu0 0.0
  %391 = vmatpush1.msra.mxu0 0.0
  %392 = vmatprep.subr.mxu0 0.0
  %393 = vmatpush1.msra.mxu0 0.0
  %394 = vmatprep.subr.mxu0 0.0
  %395 = vmatpush1.msra.mxu0 0.0
  %396 = vmatprep.subr.mxu0 0.0
  %397 = vmatpush1.msra.mxu0 0.0
  %398 = vmatprep.subr.mxu0 0.0
  %399 = vmatpush1.msra.mxu0 0.0
  %400 = vmatprep.subr.mxu0 0.0
  %401 = vmatpush1.msra.mxu0 0.0
  %402 = vmatprep.subr.mxu0 0.0
  %403 = vmatpush1.msra.mxu0 0.0
  %404 = vmatprep.subr.mxu0 0.0
  %405 = vmatpush1.msra.mxu0 0.0
  %406 = vmatprep.subr.mxu0 0.0
  %407 = vmatpush1.msra.mxu0 0.0
  %408 = vmatprep.subr.mxu0 0.0
  %409 = vmatpush1.msra.mxu0 0.0
  %410 = vmatprep.subr.mxu0 0.0
  %411 = vmatpush1.msra.mxu0 0.0
  %412 = vmatprep.subr.mxu0 0.0
  %413 = vmatpush1.msra.mxu0 0.0
  %414 = vmatprep.subr.mxu0 0.0
  %415 = vmatpush1.msra.mxu0 0.0
  %416 = vmatprep.subr.mxu0 0.0
  %417 = vmatpush1.msra.mxu0 0.0
  %418 = vmatprep.subr.mxu0 0.0
  %419 = vmatpush1.msra.mxu0 0.0
  %420 = vmatprep.subr.mxu0 0.0
  %421 = vmatpush1.msra.mxu0 0.0
  %422 = vmatprep.subr.mxu0 0.0
  %423 = vmatpush1.msra.mxu0 0.0
  %424 = vmatprep.subr.mxu0 0.0
  %425 = vmatpush1.msra.mxu0 0.0
  %426 = vmatprep.subr.mxu0 0.0
  %427 = vmatpush1.msra.mxu0 0.0
  %428 = vmatprep.subr.mxu0 0.0
  %429 = vmatpush1.msra.mxu0 0.0
  %430 = vmatprep.subr.mxu0 0.0
  %431 = vmatpush1.msra.mxu0 0.0
  %432 = vmatprep.subr.mxu0 0.0
  %433 = vmatpush1.msra.mxu0 0.0
  %434 = vmatprep.subr.mxu0 0.0
  %435 = vmatpush1.msra.mxu0 0.0
  %436 = vmatprep.subr.mxu0 0.0
  %437 = vmatpush1.msra.mxu0 0.0
  %438 = vmatprep.subr.mxu0 0.0
  %439 = vmatpush1.msra.mxu0 0.0
  %440 = vmatprep.subr.mxu0 0.0
  %441 = vmatpush1.msra.mxu0 0.0
  %442 = vmatprep.subr.mxu0 0.0
  %443 = vmatpush1.msra.mxu0 0.0
  %444 = vmatprep.subr.mxu0 0.0
  %445 = vmatpush1.msra.mxu0 0.0
  %446 = vmatprep.subr.mxu0 0.0
  %447 = vmatpush1.msra.mxu0 0.0
  %448 = vmatprep.subr.mxu0 0.0
  %449 = vmatpush1.msra.mxu0 0.0
  %450 = vmatprep.subr.mxu0 0.0
  %451 = vmatpush1.msra.mxu0 0.0
  %452 = vmatprep.mubr.f32.mxu0 0.0
  %453 = vmatmul.mubr.f32.gmra.mrb[0].mxu0 %v382
  %v454 = vpop.f32.mrb[0].mxu0
  %v455 = vadd.f32 %v204, %v454
  %v456 = vpop.f32.mrb[0].mxu0
  %457 = vmatprep.mubr.f32.mxu0 0.0
  %458 = vmatmul.mubr.f32.gmra.mrb[0].mxu0 %v384
  %v459 = vpop.f32.mrb[0].mxu0
  %v460 = vadd.f32 %v209, %v459
  %v461 = vpop.f32.mrb[0].mxu0
  %462 = vdwg.mxu0
  %v463 = vadd.f32 %v370, %v455
  %v464 = vadd.f32 %v375, %v460
  %v465 = vadd.f32 %v463, %v289
  %v466 = vadd.f32 %v464, %v294
  %vm467 = vcmask 64512
  %v468 = vsel %vm467, %v465, 0.0
  %vm469 = vcmask 58368
  %v470 = vsel %vm469, %v466, 0.0
  %v471 = vadd.f32 %v468, %v470
  %v472 = vrot.slane %v471, 4
  %v473 = vadd.f32 %v471, %v472
  %v474 = vrot.slane %v473, 2
  %v475 = vadd.f32 %v473, %v474
  %v476 = vrot.slane %v475, 1
  %v477 = vadd.f32 %v475, %v476
  %v478 = vrcp.pop 10.0
  %v479 = vmul.f32 %v477, %v478
  %v480 = vsub.f32 %v465, %v479
  %v481 = vsub.f32 %v466, %v479
  %v482 = vmul.f32 %v480, %v480
  %v483 = vmul.f32 %v481, %v481
  %v484 = vsel %vm467, %v482, 0.0
  %v485 = vsel %vm469, %v483, 0.0
  %v486 = vadd.f32 %v484, %v485
  %v487 = vrot.slane %v486, 4
  %v488 = vadd.f32 %v486, %v487
  %v489 = vrot.slane %v488, 2
  %v490 = vadd.f32 %v488, %v489
  %v491 = vrot.slane %v490, 1
  %v492 = vadd.f32 %v490, %v491
  %v493 = vmul.f32 %v492, %v478
  %v494 = vadd.f32 %v493, 1e-05
  %v495 = vrsqrt.pop %v494
  %v496 = vmul.f32 %v480, %v495
  %vm497 = vcmp.gt.f32.partialorder %v496, 20.0
  %v498 = vmin.f32 %v496, 20.0
  %v499 = vmul.f32 %v498, 1.442695
  %v500 = vpow.pop %v499
  %v501 = vadd.f32 %v500, 1.0
  %v502 = vlog2.pop %v501
  %v503 = vmul.f32 %v502, 0.6931472
  %v504 = vmul.f32 -0.5, %v500
  %v505 = vadd.f32 %v504, 1.0
  %v506 = vmul.f32 %v505, %v500
  %v507 = vand.u32 2147483647, %v500
  %vm508 = vcmp.lt.f32.partialorder %v507, 0.0004427343
  %v509 = vsel %vm508, %v506, %v503
  %v510 = vsel %vm497, %v496, %v509
  %v511 = vtanh.pop %v510
  %v512 = vmul.f32 %v496, %v511
  %vm513 = vcmask 63488
  %v514 = vsel %vm513, %v512, 0.0
  %v515 = vrot.slane %v514, 4
  %v516 = vadd.f32 %v514, %v515
  %v517 = vrot.slane %v516, 2
  %v518 = vadd.f32 %v516, %v517
  %v519 = vrot.slane %v518, 1
  %v520 = vadd.f32 %v518, %v519
  %v521 = vmul.f32 %v520, 0.125
  %v522 = vld [vmem:[%s2 + $0x18] sm:$0xff]
  %v523 = vld [vmem:[%s2 + $0x20] sm:$0xff]
  %v524 = vld [vmem:[%s2 + $0x28] sm:$0xff]
  %v525 = vld [vmem:[%s2 + $0x30] sm:$0xff]
  %v526 = vlaneseq
  %v527 = vshrl.u32 %v526, 7
  %v528 = vlaneseq
  %v529 = vand.u32 %v528, 127
  %vm530 = vcmp.eq.s32.totalorder %v527, %v529
  %v531 = vsel %vm530, 1, 0
  %v532 = vcvt.s32.f32 %v531
  %v533 = vmul.f32 %v521, %v532
  %v534 = vsel %vm467, %v533, 0.0
  %535 = vadd.xlane.f32.xlu0 %v534
  %v536 = vpop.xlane.xlu0 %535
  %v537 = vlaneseq
  %v538 = vshrl.u32 %v537, 7
  %v539 = vsub.s32 0, %v538
  %v540 = vrot.slane %v522, %v539
  %v541 = vmul.f32 %v536, %v540
  %v542 = vlaneseq
  %v543 = vshrl.u32 %v542, 7
  %v544 = vsub.s32 1, %v543
  %v545 = vrot.slane %v522, %v544
  %v546 = vadd.f32 %v541, %v545
  %v547 = vmul.f32 %v532, 0.0
  %v548 = vsel %vm467, %v547, 0.0
  %549 = vadd.xlane.f32.xlu0 %v548
  %v550 = vpop.xlane.xlu0 %549
  %v551 = vmul.f32 %v550, %v523
  %vm552 = vcmask 261120
  %v553 = vsel %vm552, %v551, 0.0
  %v554 = vrot.slane %v553, 4
  %v555 = vadd.f32 %v553, %v554
  %v556 = vrot.slane %v555, 2
  %v557 = vadd.f32 %v555, %v556
  %v558 = vrot.slane %v557, 1
  %v559 = vadd.f32 %v557, %v558
  %v560 = vadd.f32 %v546, %v559
  %v561 = vxor.u32 %v560, 2147483648
  %v562 = vmul.f32 %v561, 1.442695
  %v563 = vpow.pop %v562
  %v564 = vadd.f32 %v563, 1.0
  %v565 = vrcp.pop %v564
  %v566 = vmul.f32 1.0, %v565
  %v567 = vtanh.pop %v560
  %v568 = vmul.f32 %v566, 0.0
  %570 = vrot.lane.b32.xlu0 %v567, 112
  %v571 = vpop.permute.xlu0 %570
  %v573 = vmul.f32 %v566, %v571
  %575 = vrot.lane.b32.xlu0 %v573, 8
  %v576 = vpop.permute.xlu0 %575
  %v578 = vadd.f32 %v568, %v576
  %v579 = vtanh.pop %v578
  %581 = vrot.lane.b32.xlu0 %v579, 16
  %v582 = vpop.permute.xlu0 %581
  %v584 = vmul.f32 %v566, %v582
  %v585 = vlaneseq
  %v586 = vshrl.u32 %v585, 7
  %v587 = vsub.s32 0, %v586
  %v588 = vrot.slane %v584, %v587
  %590 = vrot.lane.b32.xlu0 %v532, 24
  %v591 = vpop.permute.xlu0 %590
  %v593 = vmul.f32 %v588, %v591
  %595 = vrot.lane.b32.xlu0 %v593, 104
  %v596 = vpop.permute.xlu0 %595
  %v598 = vsel %vm467, %v596, 0.0
  %599 = vadd.xlane.f32.xlu0 %v598
  %v600 = vpop.xlane.xlu0 %599
  %v601 = vmul.f32 %v600, %v524
  %v602 = vmul.f32 %v550, %v525
  %v603 = vadd.f32 %v601, %v602
  %v604 = vsel %vm552, %v603, 0.0
  %v605 = vrot.slane %v604, 4
  %v606 = vadd.f32 %v604, %v605
  %v607 = vrot.slane %v606, 2
  %v608 = vadd.f32 %v606, %v607
  %v609 = vrot.slane %v608, 1
  %v610 = vadd.f32 %v608, %v609
  %v611 = vadd.f32 %v610, %v522
  %v612 = vxor.u32 %v611, 2147483648
  %v613 = vmul.f32 %v612, 1.442695
  %v614 = vpow.pop %v613
  %v615 = vadd.f32 %v614, 1.0
  %v616 = vrcp.pop %v615
  %v617 = vmul.f32 1.0, %v616
  %v618 = vtanh.pop %v611
  %v619 = vmul.f32 %v617, 0.0
  %621 = vrot.lane.b32.xlu0 %v618, 112
  %v622 = vpop.permute.xlu0 %621
  %v624 = vmul.f32 %v617, %v622
  %626 = vrot.lane.b32.xlu0 %v624, 8
  %v627 = vpop.permute.xlu0 %626
  %v629 = vadd.f32 %v619, %v627
  %v630 = vtanh.pop %v629
  %632 = vrot.lane.b32.xlu0 %v630, 16
  %v633 = vpop.permute.xlu0 %632
  %v635 = vmul.f32 %v617, %v633
  %v636 = vmul.f32 %v600, %v523
  %v637 = vsel %vm552, %v636, 0.0
  %v638 = vrot.slane %v637, 4
  %v639 = vadd.f32 %v637, %v638
  %v640 = vrot.slane %v639, 2
  %v641 = vadd.f32 %v639, %v640
  %v642 = vrot.slane %v641, 1
  %v643 = vadd.f32 %v641, %v642
  %v644 = vadd.f32 %v546, %v643
  %v645 = vxor.u32 %v644, 2147483648
  %v646 = vmul.f32 %v645, 1.442695
  %v647 = vpow.pop %v646
  %v648 = vadd.f32 %v647, 1.0
  %v649 = vrcp.pop %v648
  %v650 = vmul.f32 1.0, %v649
  %v651 = vtanh.pop %v644
  %v653 = vrot.slane %v578, 7
  %v655 = vmul.f32 %v650, %v653
  %657 = vrot.lane.b32.xlu0 %v651, 112
  %v658 = vpop.permute.xlu0 %657
  %v660 = vmul.f32 %v650, %v658
  %662 = vrot.lane.b32.xlu0 %v660, 8
  %v663 = vpop.permute.xlu0 %662
  %v665 = vadd.f32 %v655, %v663
  %v666 = vtanh.pop %v665
  %668 = vrot.lane.b32.xlu0 %v666, 16
  %v669 = vpop.permute.xlu0 %668
  %v671 = vmul.f32 %v650, %v669
  %v672 = vlaneseq
  %v673 = vshrl.u32 %v672, 7
  %v674 = vsub.s32 1, %v673
  %v675 = vrot.slane %v671, %v674
  %v676 = vmul.f32 %v675, %v591
  %678 = vrot.lane.b32.xlu0 %v676, 104
  %v679 = vpop.permute.xlu0 %678
  %v681 = vsel %vm467, %v679, 0.0
  %682 = vadd.xlane.f32.xlu0 %v681
  %v683 = vpop.xlane.xlu0 %682
  %v684 = vmul.f32 %v683, %v524
  %v685 = vlaneseq
  %v686 = vshrl.u32 %v685, 7
  %v687 = vsub.s32 2, %v686
  %v688 = vrot.slane %v635, %v687
  %v689 = vmul.f32 %v688, %v591
  %691 = vrot.lane.b32.xlu0 %v689, 104
  %v692 = vpop.permute.xlu0 %691
  %v694 = vsel %vm467, %v692, 0.0
  %695 = vadd.xlane.f32.xlu0 %v694
  %v696 = vpop.xlane.xlu0 %695
  %v697 = vmul.f32 %v696, %v525
  %v698 = vadd.f32 %v684, %v697
  %v699 = vsel %vm552, %v698, 0.0
  %v700 = vrot.slane %v699, 4
  %v701 = vadd.f32 %v699, %v700
  %v702 = vrot.slane %v701, 2
  %v703 = vadd.f32 %v701, %v702
  %v704 = vrot.slane %v703, 1
  %v705 = vadd.f32 %v703, %v704
  %v706 = vadd.f32 %v705, %v522
  %v707 = vxor.u32 %v706, 2147483648
  %v708 = vmul.f32 %v707, 1.442695
  %v709 = vpow.pop %v708
  %v710 = vadd.f32 %v709, 1.0
  %v711 = vrcp.pop %v710
  %v712 = vmul.f32 1.0, %v711
  %v713 = vtanh.pop %v706
  %v714 = vmul.f32 %v712, %v629
  %716 = vrot.lane.b32.xlu0 %v713, 112
  %v717 = vpop.permute.xlu0 %716
  %v719 = vmul.f32 %v712, %v717
  %721 = vrot.lane.b32.xlu0 %v719, 8
  %v722 = vpop.permute.xlu0 %721
  %v724 = vadd.f32 %v714, %v722
  %v725 = vtanh.pop %v724
  %727 = vrot.lane.b32.xlu0 %v725, 16
  %v728 = vpop.permute.xlu0 %727
  %v730 = vmul.f32 %v712, %v728
  %v731 = vmul.f32 %v683, %v523
  %v732 = vsel %vm552, %v731, 0.0
  %v733 = vrot.slane %v732, 4
  %v734 = vadd.f32 %v732, %v733
  %v735 = vrot.slane %v734, 2
  %v736 = vadd.f32 %v734, %v735
  %v737 = vrot.slane %v736, 1
  %v738 = vadd.f32 %v736, %v737
  %v739 = vadd.f32 %v546, %v738
  %v740 = vxor.u32 %v739, 2147483648
  %v741 = vmul.f32 %v740, 1.442695
  %v742 = vpow.pop %v741
  %v743 = vadd.f32 %v742, 1.0
  %v744 = vrcp.pop %v743
  %v745 = vmul.f32 1.0, %v744
  %v746 = vtanh.pop %v739
  %v748 = vrot.slane %v665, 7
  %v750 = vmul.f32 %v745, %v748
  %752 = vrot.lane.b32.xlu0 %v746, 112
  %v753 = vpop.permute.xlu0 %752
  %v755 = vmul.f32 %v745, %v753
  %757 = vrot.lane.b32.xlu0 %v755, 8
  %v758 = vpop.permute.xlu0 %757
  %v760 = vadd.f32 %v750, %v758
  %v761 = vtanh.pop %v760
  %763 = vrot.lane.b32.xlu0 %v761, 16
  %v764 = vpop.permute.xlu0 %763
  %v766 = vmul.f32 %v745, %v764
  %v767 = vlaneseq
  %v768 = vshrl.u32 %v767, 7
  %v769 = vsub.s32 2, %v768
  %v770 = vrot.slane %v766, %v769
  %v771 = vmul.f32 %v770, %v591
  %773 = vrot.lane.b32.xlu0 %v771, 104
  %v774 = vpop.permute.xlu0 %773
  %v776 = vsel %vm467, %v774, 0.0
  %777 = vadd.xlane.f32.xlu0 %v776
  %v778 = vpop.xlane.xlu0 %777
  %v779 = vmul.f32 %v778, %v524
  %v780 = vlaneseq
  %v781 = vshrl.u32 %v780, 7
  %v782 = vsub.s32 2, %v781
  %v783 = vrot.slane %v730, %v782
  %v784 = vmul.f32 %v783, %v591
  %786 = vrot.lane.b32.xlu0 %v784, 104
  %v787 = vpop.permute.xlu0 %786
  %v789 = vsel %vm467, %v787, 0.0
  %790 = vadd.xlane.f32.xlu0 %v789
  %v791 = vpop.xlane.xlu0 %790
  %v792 = vmul.f32 %v791, %v525
  %v793 = vadd.f32 %v779, %v792
  %v794 = vsel %vm552, %v793, 0.0
  %v795 = vrot.slane %v794, 4
  %v796 = vadd.f32 %v794, %v795
  %v797 = vrot.slane %v796, 2
  %v798 = vadd.f32 %v796, %v797
  %v799 = vrot.slane %v798, 1
  %v800 = vadd.f32 %v798, %v799
  %v801 = vadd.f32 %v800, %v522
  %v802 = vxor.u32 %v801, 2147483648
  %v803 = vmul.f32 %v802, 1.442695
  %v804 = vpow.pop %v803
  %v805 = vadd.f32 %v804, 1.0
  %v806 = vrcp.pop %v805
  %v807 = vmul.f32 1.0, %v806
  %v808 = vtanh.pop %v801
  %v809 = vmul.f32 %v807, %v724
  %811 = vrot.lane.b32.xlu0 %v808, 112
  %v812 = vpop.permute.xlu0 %811
  %v814 = vmul.f32 %v807, %v812
  %816 = vrot.lane.b32.xlu0 %v814, 8
  %v817 = vpop.permute.xlu0 %816
  %v819 = vadd.f32 %v809, %v817
  %v820 = vtanh.pop %v819
  %822 = vrot.lane.b32.xlu0 %v820, 16
  %v823 = vpop.permute.xlu0 %822
  %v825 = vmul.f32 %v807, %v823
  %v826 = vmul.f32 %v778, %v523
  %v827 = vsel %vm552, %v826, 0.0
  %v828 = vrot.slane %v827, 4
  %v829 = vadd.f32 %v827, %v828
  %v830 = vrot.slane %v829, 2
  %v831 = vadd.f32 %v829, %v830
  %v832 = vrot.slane %v831, 1
  %v833 = vadd.f32 %v831, %v832
  %v834 = vadd.f32 %v546, %v833
  %v835 = vxor.u32 %v834, 2147483648
  %v836 = vmul.f32 %v835, 1.442695
  %v837 = vpow.pop %v836
  %v838 = vadd.f32 %v837, 1.0
  %v839 = vrcp.pop %v838
  %v840 = vmul.f32 1.0, %v839
  %v841 = vtanh.pop %v834
  %v843 = vrot.slane %v760, 7
  %v845 = vmul.f32 %v840, %v843
  %847 = vrot.lane.b32.xlu0 %v841, 112
  %v848 = vpop.permute.xlu0 %847
  %v850 = vmul.f32 %v840, %v848
  %852 = vrot.lane.b32.xlu0 %v850, 8
  %v853 = vpop.permute.xlu0 %852
  %v855 = vadd.f32 %v845, %v853
  %v856 = vtanh.pop %v855
  %858 = vrot.lane.b32.xlu0 %v856, 16
  %v859 = vpop.permute.xlu0 %858
  %v861 = vmul.f32 %v840, %v859
  %v862 = vlaneseq
  %v863 = vshrl.u32 %v862, 7
  %v864 = vsub.s32 3, %v863
  %v865 = vrot.slane %v861, %v864
  %v866 = vmul.f32 %v865, %v591
  %868 = vrot.lane.b32.xlu0 %v866, 104
  %v869 = vpop.permute.xlu0 %868
  %v871 = vsel %vm467, %v869, 0.0
  %872 = vadd.xlane.f32.xlu0 %v871
  %v873 = vpop.xlane.xlu0 %872
  %v874 = vmul.f32 %v873, %v524
  %v875 = vlaneseq
  %v876 = vshrl.u32 %v875, 7
  %v877 = vsub.s32 2, %v876
  %v878 = vrot.slane %v825, %v877
  %v879 = vmul.f32 %v878, %v591
  %881 = vrot.lane.b32.xlu0 %v879, 104
  %v882 = vpop.permute.xlu0 %881
  %v884 = vsel %vm467, %v882, 0.0
  %885 = vadd.xlane.f32.xlu0 %v884
  %v886 = vpop.xlane.xlu0 %885
  %v887 = vmul.f32 %v886, %v525
  %v888 = vadd.f32 %v874, %v887
  %v889 = vsel %vm552, %v888, 0.0
  %v890 = vrot.slane %v889, 4
  %v891 = vadd.f32 %v889, %v890
  %v892 = vrot.slane %v891, 2
  %v893 = vadd.f32 %v891, %v892
  %v894 = vrot.slane %v893, 1
  %v895 = vadd.f32 %v893, %v894
  %v896 = vadd.f32 %v895, %v522
  %v897 = vxor.u32 %v896, 2147483648
  %v898 = vmul.f32 %v897, 1.442695
  %v899 = vpow.pop %v898
  %v900 = vadd.f32 %v899, 1.0
  %v901 = vrcp.pop %v900
  %v902 = vmul.f32 1.0, %v901
  %v903 = vtanh.pop %v896
  %v904 = vmul.f32 %v902, %v819
  %906 = vrot.lane.b32.xlu0 %v903, 112
  %v907 = vpop.permute.xlu0 %906
  %v909 = vmul.f32 %v902, %v907
  %911 = vrot.lane.b32.xlu0 %v909, 8
  %v912 = vpop.permute.xlu0 %911
  %v914 = vadd.f32 %v904, %v912
  %v915 = vtanh.pop %v914
  %917 = vrot.lane.b32.xlu0 %v915, 16
  %v918 = vpop.permute.xlu0 %917
  %v920 = vmul.f32 %v902, %v918
  %v921 = vmul.f32 %v873, %v523
  %v922 = vsel %vm552, %v921, 0.0
  %v923 = vrot.slane %v922, 4
  %v924 = vadd.f32 %v922, %v923
  %v925 = vrot.slane %v924, 2
  %v926 = vadd.f32 %v924, %v925
  %v927 = vrot.slane %v926, 1
  %v928 = vadd.f32 %v926, %v927
  %v929 = vadd.f32 %v546, %v928
  %v930 = vxor.u32 %v929, 2147483648
  %v931 = vmul.f32 %v930, 1.442695
  %v932 = vpow.pop %v931
  %v933 = vadd.f32 %v932, 1.0
  %v934 = vrcp.pop %v933
  %v935 = vmul.f32 1.0, %v934
  %v936 = vtanh.pop %v929
  %v938 = vrot.slane %v855, 7
  %v940 = vmul.f32 %v935, %v938
  %942 = vrot.lane.b32.xlu0 %v936, 112
  %v943 = vpop.permute.xlu0 %942
  %v945 = vmul.f32 %v935, %v943
  %947 = vrot.lane.b32.xlu0 %v945, 8
  %v948 = vpop.permute.xlu0 %947
  %v950 = vadd.f32 %v940, %v948
  %v951 = vtanh.pop %v950
  %953 = vrot.lane.b32.xlu0 %v951, 16
  %v954 = vpop.permute.xlu0 %953
  %v956 = vmul.f32 %v935, %v954
  %v957 = vlaneseq
  %v958 = vshrl.u32 %v957, 7
  %v959 = vsub.s32 4, %v958
  %v960 = vrot.slane %v956, %v959
  %v961 = vmul.f32 %v960, %v591
  %963 = vrot.lane.b32.xlu0 %v961, 104
  %v964 = vpop.permute.xlu0 %963
  %v966 = vsel %vm467, %v964, 0.0
  %967 = vadd.xlane.f32.xlu0 %v966
  %v968 = vpop.xlane.xlu0 %967
  %v969 = vmul.f32 %v968, %v524
  %v970 = vlaneseq
  %v971 = vshrl.u32 %v970, 7
  %v972 = vsub.s32 2, %v971
  %v973 = vrot.slane %v920, %v972
  %v974 = vmul.f32 %v973, %v591
  %976 = vrot.lane.b32.xlu0 %v974, 104
  %v977 = vpop.permute.xlu0 %976
  %v979 = vsel %vm467, %v977, 0.0
  %980 = vadd.xlane.f32.xlu0 %v979
  %v981 = vpop.xlane.xlu0 %980
  %v982 = vmul.f32 %v981, %v525
  %v983 = vadd.f32 %v969, %v982
  %v984 = vsel %vm552, %v983, 0.0
  %v985 = vrot.slane %v984, 4
  %v986 = vadd.f32 %v984, %v985
  %v987 = vrot.slane %v986, 2
  %v988 = vadd.f32 %v986, %v987
  %v989 = vrot.slane %v988, 1
  %v990 = vadd.f32 %v988, %v989
  %v991 = vadd.f32 %v990, %v522
  %v992 = vxor.u32 %v991, 2147483648
  %v993 = vmul.f32 %v992, 1.442695
  %v994 = vpow.pop %v993
  %v995 = vadd.f32 %v994, 1.0
  %v996 = vrcp.pop %v995
  %v997 = vmul.f32 1.0, %v996
  %v998 = vtanh.pop %v991
  %v999 = vmul.f32 %v997, %v914
  %1001 = vrot.lane.b32.xlu0 %v998, 112
  %v1002 = vpop.permute.xlu0 %1001
  %v1004 = vmul.f32 %v997, %v1002
  %1006 = vrot.lane.b32.xlu0 %v1004, 8
  %v1007 = vpop.permute.xlu0 %1006
  %v1009 = vadd.f32 %v999, %v1007
  %v1010 = vtanh.pop %v1009
  %1012 = vrot.lane.b32.xlu0 %v1010, 16
  %v1013 = vpop.permute.xlu0 %1012
  %v1015 = vmul.f32 %v997, %v1013
  %v1016 = vmul.f32 %v968, %v523
  %v1017 = vsel %vm552, %v1016, 0.0
  %v1018 = vrot.slane %v1017, 4
  %v1019 = vadd.f32 %v1017, %v1018
  %v1020 = vrot.slane %v1019, 2
  %v1021 = vadd.f32 %v1019, %v1020
  %v1022 = vrot.slane %v1021, 1
  %v1023 = vadd.f32 %v1021, %v1022
  %v1024 = vadd.f32 %v546, %v1023
  %v1025 = vxor.u32 %v1024, 2147483648
  %v1026 = vmul.f32 %v1025, 1.442695
  %v1027 = vpow.pop %v1026
  %v1028 = vadd.f32 %v1027, 1.0
  %v1029 = vrcp.pop %v1028
  %v1030 = vmul.f32 1.0, %v1029
  %v1031 = vtanh.pop %v1024
  %v1033 = vrot.slane %v950, 7
  %v1035 = vmul.f32 %v1030, %v1033
  %1037 = vrot.lane.b32.xlu0 %v1031, 112
  %v1038 = vpop.permute.xlu0 %1037
  %v1040 = vmul.f32 %v1030, %v1038
  %1042 = vrot.lane.b32.xlu0 %v1040, 8
  %v1043 = vpop.permute.xlu0 %1042
  %v1045 = vadd.f32 %v1035, %v1043
  %v1046 = vtanh.pop %v1045
  %1048 = vrot.lane.b32.xlu0 %v1046, 16
  %v1049 = vpop.permute.xlu0 %1048
  %v1051 = vmul.f32 %v1030, %v1049
  %v1052 = vlaneseq
  %v1053 = vshrl.u32 %v1052, 7
  %v1054 = vsub.s32 5, %v1053
  %v1055 = vrot.slane %v1051, %v1054
  %v1056 = vmul.f32 %v1055, %v591
  %1058 = vrot.lane.b32.xlu0 %v1056, 104
  %v1059 = vpop.permute.xlu0 %1058
  %v1061 = vsel %vm467, %v1059, 0.0
  %1062 = vadd.xlane.f32.xlu0 %v1061
  %v1063 = vpop.xlane.xlu0 %1062
  %v1064 = vmul.f32 %v1063, %v524
  %v1065 = vlaneseq
  %v1066 = vshrl.u32 %v1065, 7
  %v1067 = vsub.s32 2, %v1066
  %v1068 = vrot.slane %v1015, %v1067
  %v1069 = vmul.f32 %v1068, %v591
  %1071 = vrot.lane.b32.xlu0 %v1069, 104
  %v1072 = vpop.permute.xlu0 %1071
  %v1074 = vsel %vm467, %v1072, 0.0
  %1075 = vadd.xlane.f32.xlu0 %v1074
  %v1076 = vpop.xlane.xlu0 %1075
  %v1077 = vmul.f32 %v1076, %v525
  %v1078 = vadd.f32 %v1064, %v1077
  %v1079 = vsel %vm552, %v1078, 0.0
  %v1080 = vrot.slane %v1079, 4
  %v1081 = vadd.f32 %v1079, %v1080
  %v1082 = vrot.slane %v1081, 2
  %v1083 = vadd.f32 %v1081, %v1082
  %v1084 = vrot.slane %v1083, 1
  %v1085 = vadd.f32 %v1083, %v1084
  %v1086 = vadd.f32 %v1085, %v522
  %v1087 = vxor.u32 %v1086, 2147483648
  %v1088 = vmul.f32 %v1087, 1.442695
  %v1089 = vpow.pop %v1088
  %v1090 = vadd.f32 %v1089, 1.0
  %v1091 = vrcp.pop %v1090
  %v1092 = vmul.f32 1.0, %v1091
  %v1093 = vtanh.pop %v1086
  %v1094 = vmul.f32 %v1092, %v1009
  %1096 = vrot.lane.b32.xlu0 %v1093, 112
  %v1097 = vpop.permute.xlu0 %1096
  %v1099 = vmul.f32 %v1092, %v1097
  %1101 = vrot.lane.b32.xlu0 %v1099, 8
  %v1102 = vpop.permute.xlu0 %1101
  %v1104 = vadd.f32 %v1094, %v1102
  %v1105 = vtanh.pop %v1104
  %1107 = vrot.lane.b32.xlu0 %v1105, 16
  %v1108 = vpop.permute.xlu0 %1107
  %v1110 = vmul.f32 %v1092, %v1108
  %v1111 = vmul.f32 %v1063, %v523
  %v1112 = vsel %vm552, %v1111, 0.0
  %v1113 = vrot.slane %v1112, 4
  %v1114 = vadd.f32 %v1112, %v1113
  %v1115 = vrot.slane %v1114, 2
  %v1116 = vadd.f32 %v1114, %v1115
  %v1117 = vrot.slane %v1116, 1
  %v1118 = vadd.f32 %v1116, %v1117
  %v1119 = vadd.f32 %v546, %v1118
  %v1120 = vxor.u32 %v1119, 2147483648
  %v1121 = vmul.f32 %v1120, 1.442695
  %v1122 = vpow.pop %v1121
  %v1123 = vadd.f32 %v1122, 1.0
  %v1124 = vrcp.pop %v1123
  %v1125 = vmul.f32 1.0, %v1124
  %v1126 = vtanh.pop %v1119
  %v1128 = vrot.slane %v1045, 7
  %v1130 = vmul.f32 %v1125, %v1128
  %1132 = vrot.lane.b32.xlu0 %v1126, 112
  %v1133 = vpop.permute.xlu0 %1132
  %v1135 = vmul.f32 %v1125, %v1133
  %1137 = vrot.lane.b32.xlu0 %v1135, 8
  %v1138 = vpop.permute.xlu0 %1137
  %v1140 = vadd.f32 %v1130, %v1138
  %v1141 = vtanh.pop %v1140
  %1143 = vrot.lane.b32.xlu0 %v1141, 16
  %v1144 = vpop.permute.xlu0 %1143
  %v1146 = vmul.f32 %v1125, %v1144
  %v1147 = vlaneseq
  %v1148 = vshrl.u32 %v1147, 7
  %v1149 = vsub.s32 6, %v1148
  %v1150 = vrot.slane %v1146, %v1149
  %v1151 = vmul.f32 %v1150, %v591
  %1153 = vrot.lane.b32.xlu0 %v1151, 104
  %v1154 = vpop.permute.xlu0 %1153
  %v1156 = vsel %vm467, %v1154, 0.0
  %1157 = vadd.xlane.f32.xlu0 %v1156
  %v1158 = vpop.xlane.xlu0 %1157
  %v1159 = vmul.f32 %v1158, %v524
  %v1160 = vlaneseq
  %v1161 = vshrl.u32 %v1160, 7
  %v1162 = vsub.s32 2, %v1161
  %v1163 = vrot.slane %v1110, %v1162
  %v1164 = vmul.f32 %v1163, %v591
  %1166 = vrot.lane.b32.xlu0 %v1164, 104
  %v1167 = vpop.permute.xlu0 %1166
  %v1169 = vsel %vm467, %v1167, 0.0
  %1170 = vadd.xlane.f32.xlu0 %v1169
  %v1171 = vpop.xlane.xlu0 %1170
  %v1172 = vmul.f32 %v1171, %v525
  %v1173 = vadd.f32 %v1159, %v1172
  %v1174 = vsel %vm552, %v1173, 0.0
  %v1175 = vrot.slane %v1174, 4
  %v1176 = vadd.f32 %v1174, %v1175
  %v1177 = vrot.slane %v1176, 2
  %v1178 = vadd.f32 %v1176, %v1177
  %v1179 = vrot.slane %v1178, 1
  %v1180 = vadd.f32 %v1178, %v1179
  %v1181 = vadd.f32 %v1180, %v522
  %v1182 = vxor.u32 %v1181, 2147483648
  %v1183 = vmul.f32 %v1182, 1.442695
  %v1184 = vpow.pop %v1183
  %v1185 = vadd.f32 %v1184, 1.0
  %v1186 = vrcp.pop %v1185
  %v1187 = vmul.f32 1.0, %v1186
  %v1188 = vtanh.pop %v1181
  %v1189 = vmul.f32 %v1187, %v1104
  %1191 = vrot.lane.b32.xlu0 %v1188, 112
  %v1192 = vpop.permute.xlu0 %1191
  %v1194 = vmul.f32 %v1187, %v1192
  %1196 = vrot.lane.b32.xlu0 %v1194, 8
  %v1197 = vpop.permute.xlu0 %1196
  %v1199 = vadd.f32 %v1189, %v1197
  %v1200 = vtanh.pop %v1199
  %1202 = vrot.lane.b32.xlu0 %v1200, 16
  %v1203 = vpop.permute.xlu0 %1202
  %v1205 = vmul.f32 %v1187, %v1203
  %v1206 = vmul.f32 %v1158, %v523
  %v1207 = vsel %vm552, %v1206, 0.0
  %v1208 = vrot.slane %v1207, 4
  %v1209 = vadd.f32 %v1207, %v1208
  %v1210 = vrot.slane %v1209, 2
  %v1211 = vadd.f32 %v1209, %v1210
  %v1212 = vrot.slane %v1211, 1
  %v1213 = vadd.f32 %v1211, %v1212
  %v1214 = vadd.f32 %v546, %v1213
  %v1215 = vxor.u32 %v1214, 2147483648
  %v1216 = vmul.f32 %v1215, 1.442695
  %v1217 = vpow.pop %v1216
  %v1218 = vadd.f32 %v1217, 1.0
  %v1219 = vrcp.pop %v1218
  %v1220 = vmul.f32 1.0, %v1219
  %v1221 = vtanh.pop %v1214
  %v1223 = vrot.slane %v1140, 7
  %v1225 = vmul.f32 %v1220, %v1223
  %1227 = vrot.lane.b32.xlu0 %v1221, 112
  %v1228 = vpop.permute.xlu0 %1227
  %v1230 = vmul.f32 %v1220, %v1228
  %1232 = vrot.lane.b32.xlu0 %v1230, 8
  %v1233 = vpop.permute.xlu0 %1232
  %v1235 = vadd.f32 %v1225, %v1233
  %v1236 = vtanh.pop %v1235
  %1238 = vrot.lane.b32.xlu0 %v1236, 16
  %v1239 = vpop.permute.xlu0 %1238
  %v1241 = vmul.f32 %v1220, %v1239
  %v1242 = vlaneseq
  %v1243 = vshrl.u32 %v1242, 7
  %v1244 = vsub.s32 7, %v1243
  %v1245 = vrot.slane %v1241, %v1244
  %v1246 = vmul.f32 %v1245, %v591
  %1248 = vrot.lane.b32.xlu0 %v1246, 104
  %v1249 = vpop.permute.xlu0 %1248
  %v1251 = vsel %vm467, %v1249, 0.0
  %1252 = vadd.xlane.f32.xlu0 %v1251
  %v1253 = vpop.xlane.xlu0 %1252
  %v1254 = vmul.f32 %v1253, %v524
  %v1255 = vlaneseq
  %v1256 = vshrl.u32 %v1255, 7
  %v1257 = vsub.s32 2, %v1256
  %v1258 = vrot.slane %v1205, %v1257
  %v1259 = vmul.f32 %v1258, %v591
  %1261 = vrot.lane.b32.xlu0 %v1259, 104
  %v1262 = vpop.permute.xlu0 %1261
  %v1264 = vsel %vm467, %v1262, 0.0
  %1265 = vadd.xlane.f32.xlu0 %v1264
  %v1266 = vpop.xlane.xlu0 %1265
  %v1267 = vmul.f32 %v1266, %v525
  %v1268 = vadd.f32 %v1254, %v1267
  %v1269 = vsel %vm552, %v1268, 0.0
  %v1270 = vrot.slane %v1269, 4
  %v1271 = vadd.f32 %v1269, %v1270
  %v1272 = vrot.slane %v1271, 2
  %v1273 = vadd.f32 %v1271, %v1272
  %v1274 = vrot.slane %v1273, 1
  %v1275 = vadd.f32 %v1273, %v1274
  %v1276 = vadd.f32 %v1275, %v522
  %v1277 = vxor.u32 %v1276, 2147483648
  %v1278 = vmul.f32 %v1277, 1.442695
  %v1279 = vpow.pop %v1278
  %v1280 = vadd.f32 %v1279, 1.0
  %v1281 = vrcp.pop %v1280
  %v1282 = vmul.f32 1.0, %v1281
  %v1283 = vtanh.pop %v1276
  %v1284 = vmul.f32 %v1282, %v1199
  %1286 = vrot.lane.b32.xlu0 %v1283, 112
  %v1287 = vpop.permute.xlu0 %1286
  %v1289 = vmul.f32 %v1282, %v1287
  %1291 = vrot.lane.b32.xlu0 %v1289, 8
  %v1292 = vpop.permute.xlu0 %1291
  %v1294 = vadd.f32 %v1284, %v1292
  %v1295 = vtanh.pop %v1294
  %1297 = vrot.lane.b32.xlu0 %v1295, 16
  %v1298 = vpop.permute.xlu0 %1297
  %v1300 = vmul.f32 %v1282, %v1298
  %v1301 = vld [vmem:[%s3 + $0x10] sm:$0xff]
  %v1302 = vld [vmem:[%s3 + $0x18] sm:$0xff]
  %v1303 = vld [vmem:[%s3 + $0x20] sm:$0x11]
  %v1304 = vld [vmem:[%s3 + $0x28] sm:$0x11]
  %v1305 = vlaneseq
  %v1306 = vshrl.u32 %v1305, 7
  %v1307 = vsub.s32 2, %v1306
  %v1308 = vrot.slane %v1300, %v1307
  %v1309 = vmul.f32 %v1308, %v591
  %1311 = vrot.lane.b32.xlu0 %v1309, 104
  %v1312 = vpop.permute.xlu0 %1311
  %v1314 = vsel %vm467, %v1312, 0.0
  %1315 = vadd.xlane.f32.xlu0 %v1314
  %v1316 = vpop.xlane.xlu0 %1315
  %v1317 = vunpack.c.l.bf16 %v1301
  %v1318 = vunpack.c.h.bf16 %v1301
  %v1319 = vunpack.c.l.bf16 %v1302
  %v1320 = vunpack.c.h.bf16 %v1302
  %v1321 = vmul.f32 %v1316, %v1317
  %v1322 = vmul.f32 %v1316, %v1318
  %v1323 = vmul.f32 %v1316, %v1319
  %v1324 = vmul.f32 %v1316, %v1320
  %v1325 = vrot.slane %v1321, 4
  %v1326 = vadd.f32 %v1321, %v1325
  %v1327 = vrot.slane %v1326, 2
  %v1328 = vadd.f32 %v1326, %v1327
  %v1329 = vrot.slane %v1328, 1
  %v1330 = vadd.f32 %v1328, %v1329
  %v1331 = vrot.slane %v1322, 4
  %v1332 = vadd.f32 %v1322, %v1331
  %v1333 = vrot.slane %v1332, 2
  %v1334 = vadd.f32 %v1332, %v1333
  %v1335 = vrot.slane %v1334, 1
  %v1336 = vadd.f32 %v1334, %v1335
  %v1337 = vrot.slane %v1323, 4
  %v1338 = vadd.f32 %v1323, %v1337
  %v1339 = vrot.slane %v1338, 2
  %v1340 = vadd.f32 %v1338, %v1339
  %v1341 = vrot.slane %v1340, 1
  %v1342 = vadd.f32 %v1340, %v1341
  %v1343 = vrot.slane %v1324, 4
  %v1344 = vadd.f32 %v1324, %v1343
  %v1345 = vrot.slane %v1344, 2
  %v1346 = vadd.f32 %v1344, %v1345
  %v1347 = vrot.slane %v1346, 1
  %v1348 = vadd.f32 %v1346, %v1347
  %v1351 = vunpack.c.l.b16 %v22
  %v1352 = vunpack.c.h.b16 %v22
  %v1353 = vunpack.c.l.b16 %v23
  %v1354 = vunpack.c.h.b16 %v23
  %v1355 = vpack.c.b16 %v1351, %v1351
  %v1356 = vpack.c.b16 %v1352, %v1352
  %v1357 = vpack.c.b16 %v1353, %v1353
  %v1358 = vpack.c.b16 %v1354, %v1354
  %v1360 = vsel %vm25, %v24, 0
  %vm1362 = vcmask 1041408
  %v1364 = vsel %vm1362, %v1355, 0
  %v1367 = vsel %vm1362, %v1356, 0
  %v1370 = vsel %vm1362, %v1357, 0
  %v1373 = vsel %vm1362, %v1358, 0
  %1375 = vmatprep.subr.bf16.mxu0 %v1367
  %1376 = vmatpush1.bf16.msra.mxu0 %v1364
  %1377 = vmatprep.subr.bf16.mxu0 0
  %1378 = vmatpush1.bf16.msra.mxu0 0
  %1379 = vmatprep.subr.bf16.mxu0 0
  %1380 = vmatpush1.bf16.msra.mxu0 0
  %1381 = vmatprep.subr.bf16.mxu0 0
  %1382 = vmatpush1.bf16.msra.mxu0 0
  %1383 = vmatprep.subr.bf16.mxu0 0
  %1384 = vmatpush1.bf16.msra.mxu0 0
  %1385 = vmatprep.subr.bf16.mxu0 0
  %1386 = vmatpush1.bf16.msra.mxu0 0
  %1387 = vmatprep.subr.bf16.mxu0 0
  %1388 = vmatpush1.bf16.msra.mxu0 0
  %1389 = vmatprep.subr.bf16.mxu0 0
  %1390 = vmatpush1.bf16.msra.mxu0 0
  %1391 = vmatprep.subr.bf16.mxu0 0
  %1392 = vmatpush1.bf16.msra.mxu0 0
  %1393 = vmatprep.subr.bf16.mxu0 0
  %1394 = vmatpush1.bf16.msra.mxu0 0
  %1395 = vmatprep.subr.bf16.mxu0 0
  %1396 = vmatpush1.bf16.msra.mxu0 0
  %1397 = vmatprep.subr.bf16.mxu0 0
  %1398 = vmatpush1.bf16.msra.mxu0 0
  %1399 = vmatprep.subr.bf16.mxu0 0
  %1400 = vmatpush1.bf16.msra.mxu0 0
  %1401 = vmatprep.subr.bf16.mxu0 0
  %1402 = vmatpush1.bf16.msra.mxu0 0
  %1403 = vmatprep.subr.bf16.mxu0 0
  %1404 = vmatpush1.bf16.msra.mxu0 0
  %1405 = vmatprep.subr.bf16.mxu0 0
  %1406 = vmatpush1.bf16.msra.mxu0 0
  %1407 = vmatprep.mubr.bf16.mxu0 0
  %1408 = vmatmul.mubr.bf16.gmra.mrb[0].mxu0 %v1360
  %v1409 = vpop.f32.mrb[0].mxu0
  %v1410 = vadd.f32 %v1330, %v1409
  %v1411 = vpop.f32.mrb[0].mxu0
  %v1412 = vadd.f32 %v1336, %v1411
  %v1413 = vpop.f32.mrb[0].mxu0
  %v1414 = vpop.f32.mrb[0].mxu0
  %1415 = vdwg.mxu0
  %1416 = vmatprep.subr.bf16.mxu0 %v1373
  %1417 = vmatpush1.bf16.msra.mxu0 %v1370
  %1418 = vmatprep.subr.bf16.mxu0 0
  %1419 = vmatpush1.bf16.msra.mxu0 0
  %1420 = vmatprep.subr.bf16.mxu0 0
  %1421 = vmatpush1.bf16.msra.mxu0 0
  %1422 = vmatprep.subr.bf16.mxu0 0
  %1423 = vmatpush1.bf16.msra.mxu0 0
  %1424 = vmatprep.subr.bf16.mxu0 0
  %1425 = vmatpush1.bf16.msra.mxu0 0
  %1426 = vmatprep.subr.bf16.mxu0 0
  %1427 = vmatpush1.bf16.msra.mxu0 0
  %1428 = vmatprep.subr.bf16.mxu0 0
  %1429 = vmatpush1.bf16.msra.mxu0 0
  %1430 = vmatprep.subr.bf16.mxu0 0
  %1431 = vmatpush1.bf16.msra.mxu0 0
  %1432 = vmatprep.subr.bf16.mxu0 0
  %1433 = vmatpush1.bf16.msra.mxu0 0
  %1434 = vmatprep.subr.bf16.mxu0 0
  %1435 = vmatpush1.bf16.msra.mxu0 0
  %1436 = vmatprep.subr.bf16.mxu0 0
  %1437 = vmatpush1.bf16.msra.mxu0 0
  %1438 = vmatprep.subr.bf16.mxu0 0
  %1439 = vmatpush1.bf16.msra.mxu0 0
  %1440 = vmatprep.subr.bf16.mxu0 0
  %1441 = vmatpush1.bf16.msra.mxu0 0
  %1442 = vmatprep.subr.bf16.mxu0 0
  %1443 = vmatpush1.bf16.msra.mxu0 0
  %1444 = vmatprep.subr.bf16.mxu0 0
  %1445 = vmatpush1.bf16.msra.mxu0 0
  %1446 = vmatprep.subr.bf16.mxu0 0
  %1447 = vmatpush1.bf16.msra.mxu0 0
  %1448 = vmatprep.mubr.bf16.mxu0 0
  %1449 = vmatmul.mubr.bf16.gmra.mrb[0].mxu0 %v1360
  %v1450 = vpop.f32.mrb[0].mxu0
  %v1451 = vadd.f32 %v1342, %v1450
  %v1452 = vpop.f32.mrb[0].mxu0
  %v1453 = vadd.f32 %v1348, %v1452
  %v1454 = vpop.f32.mrb[0].mxu0
  %v1455 = vpop.f32.mrb[0].mxu0
  %1456 = vdwg.mxu0
  %v1457 = vunpack.c.l.bf16 %v1303
  %v1458 = vunpack.c.h.bf16 %v1303
  %v1459 = vunpack.c.l.bf16 %v1304
  %v1460 = vunpack.c.h.bf16 %v1304
  %v1461 = vlaneseq
  %v1462 = vshrl.u32 %v1461, 7
  %v1463 = vsub.s32 0, %v1462
  %v1464 = vrot.slane %v1457, %v1463
  %v1465 = vlaneseq
  %v1466 = vshrl.u32 %v1465, 7
  %v1467 = vsub.s32 0, %v1466
  %v1468 = vrot.slane %v1458, %v1467
  %v1469 = vlaneseq
  %v1470 = vshrl.u32 %v1469, 7
  %v1471 = vsub.s32 0, %v1470
  %v1472 = vrot.slane %v1459, %v1471
  %v1473 = vlaneseq
  %v1474 = vshrl.u32 %v1473, 7
  %v1475 = vsub.s32 0, %v1474
  %v1476 = vrot.slane %v1460, %v1475
  %v1477 = vadd.f32 %v1410, %v1464
  %v1478 = vadd.f32 %v1412, %v1468
  %v1479 = vadd.f32 %v1451, %v1472
  %v1480 = vadd.f32 %v1453, %v1476
  %v1481 = vtanh.pop %v1477
  %v1482 = vtanh.pop %v1478
  %v1483 = vtanh.pop %v1479
  %v1484 = vtanh.pop %v1480
  %v1485 = vpack.c.bf16 %v1481, %v1481
  %v1486 = vpack.c.bf16 %v1482, %v1482
  %v1487 = vpack.c.bf16 %v1483, %v1483
  %v1488 = vpack.c.bf16 %v1484, %v1484
  %v1489 = vld [vmem:[%s4] sm:$0xf]
  %v1490 = vld [vmem:[%s4 + $0x4] sm:$0xf]
  %v1491 = vld [vmem:[%s4 + $0x8] sm:$0xf]
  %v1492 = vld [vmem:[%s4 + $0xc] sm:$0xf]
  %v1493 = vld [vmem:[%s4 + $0x10] sm:$0xf]
  %v1494 = vld [vmem:[%s4 + $0x14] sm:$0xf]
  %v1495 = vld [vmem:[%s4 + $0x18] sm:$0xf]
  %v1496 = vld [vmem:[%s4 + $0x1c] sm:$0xf]
  %v1497 = vld [vmem:[%s4 + $0x20] sm:$0xf]
  %v1498 = vld [vmem:[%s4 + $0x24] sm:$0xf]
  %v1499 = vld [vmem:[%s4 + $0x28] sm:$0xf]
  %v1500 = vld [vmem:[%s4 + $0x2c] sm:$0xf]
  %v1501 = vld [vmem:[%s4 + $0x30] sm:$0xf]
  %v1502 = vld [vmem:[%s4 + $0x34] sm:$0xf]
  %v1503 = vld [vmem:[%s4 + $0x38] sm:$0xf]
  %v1504 = vld [vmem:[%s4 + $0x3c] sm:$0xf]
  %v1505 = vld [vmem:[%s4 + $0x40] sm:$0xf]
  %v1506 = vld [vmem:[%s4 + $0x44] sm:$0xf]
  %v1507 = vld [vmem:[%s4 + $0x48] sm:$0xf]
  %v1508 = vld [vmem:[%s4 + $0x4c] sm:$0xf]
  %v1509 = vld [vmem:[%s4 + $0x50] sm:$0xf]
  %v1510 = vld [vmem:[%s4 + $0x54] sm:$0xf]
  %v1511 = vld [vmem:[%s4 + $0x58] sm:$0xf]
  %v1512 = vld [vmem:[%s4 + $0x5c] sm:$0xf]
  %v1513 = vld [vmem:[%s4 + $0x60] sm:$0xf]
  %v1514 = vld [vmem:[%s4 + $0x64] sm:$0xf]
  %v1515 = vld [vmem:[%s4 + $0x68] sm:$0xf]
  %v1516 = vld [vmem:[%s4 + $0x6c] sm:$0xf]
  %v1517 = vld [vmem:[%s4 + $0x70] sm:$0xf]
  %v1518 = vld [vmem:[%s4 + $0x74] sm:$0xf]
  %v1519 = vld [vmem:[%s4 + $0x78] sm:$0xf]
  %v1520 = vld [vmem:[%s4 + $0x7c] sm:$0xf]
  %v1521 = vld [vmem:[%s4 + $0x80] sm:$0xf]
  %v1522 = vld [vmem:[%s4 + $0x84] sm:$0xf]
  %v1523 = vld [vmem:[%s4 + $0x88] sm:$0xf]
  %v1524 = vld [vmem:[%s4 + $0x8c] sm:$0xf]
  %v1525 = vld [vmem:[%s4 + $0x90] sm:$0xf]
  %v1526 = vld [vmem:[%s4 + $0x94] sm:$0xf]
  %v1527 = vld [vmem:[%s4 + $0x98] sm:$0xf]
  %v1528 = vld [vmem:[%s4 + $0x9c] sm:$0xf]
  %v1529 = vld [vmem:[%s4 + $0xa0] sm:$0xf]
  %v1530 = vld [vmem:[%s4 + $0xa4] sm:$0xf]
  %v1531 = vld [vmem:[%s4 + $0xa8] sm:$0xf]
  %v1532 = vld [vmem:[%s4 + $0xac] sm:$0xf]
  %v1533 = vld [vmem:[%s4 + $0xb0] sm:$0xf]
  %v1534 = vld [vmem:[%s4 + $0xb4] sm:$0xf]
  %v1535 = vld [vmem:[%s4 + $0xb8] sm:$0xf]
  %v1536 = vld [vmem:[%s4 + $0xbc] sm:$0xf]
  %v1537 = vld [vmem:[%s4 + $0xc0] sm:$0xf]
  %v1538 = vld [vmem:[%s4 + $0xc4] sm:$0xf]
  %v1539 = vld [vmem:[%s4 + $0xc8] sm:$0xf]
  %v1540 = vld [vmem:[%s4 + $0xcc] sm:$0xf]
  %v1541 = vld [vmem:[%s4 + $0xd0] sm:$0xf]
  %v1542 = vld [vmem:[%s4 + $0xd4] sm:$0xf]
  %v1543 = vld [vmem:[%s4 + $0xd8] sm:$0xf]
  %v1544 = vld [vmem:[%s4 + $0xdc] sm:$0xf]
  %v1545 = vld [vmem:[%s4 + $0xe0] sm:$0xf]
  %v1546 = vld [vmem:[%s4 + $0xe4] sm:$0xf]
  %v1547 = vld [vmem:[%s4 + $0xe8] sm:$0xf]
  %v1548 = vld [vmem:[%s4 + $0xec] sm:$0xf]
  %v1549 = vld [vmem:[%s4 + $0xf0] sm:$0xf]
  %v1550 = vld [vmem:[%s4 + $0xf4] sm:$0xf]
  %v1551 = vld [vmem:[%s4 + $0xf8] sm:$0xf]
  %v1552 = vld [vmem:[%s4 + $0xfc] sm:$0xf]
  %v1553 = vlaneseq
  %v1554 = vshrl.u32 %v1553, 7
  %v1555 = vsub.s32 3, %v1554
  %v1556 = vrot.slane %v522, %v1555
  %v1621 = vunpack.c.l.b16 %v1489
  %v1622 = vunpack.c.l.b16 %v1490
  %v1623 = vunpack.c.l.b16 %v1491
  %v1624 = vunpack.c.l.b16 %v1492
  %v1625 = vunpack.c.l.b16 %v1493
  %v1626 = vunpack.c.l.b16 %v1494
  %v1627 = vunpack.c.l.b16 %v1495
  %v1628 = vunpack.c.l.b16 %v1496
  %v1629 = vunpack.c.l.b16 %v1497
  %v1630 = vunpack.c.l.b16 %v1498
  %v1631 = vunpack.c.l.b16 %v1499
  %v1632 = vunpack.c.l.b16 %v1500
  %v1633 = vunpack.c.l.b16 %v1501
  %v1634 = vunpack.c.l.b16 %v1502
  %v1635 = vunpack.c.l.b16 %v1503
  %v1636 = vunpack.c.l.b16 %v1504
  %v1637 = vunpack.c.l.b16 %v1505
  %v1638 = vunpack.c.l.b16 %v1506
  %v1639 = vunpack.c.l.b16 %v1507
  %v1640 = vunpack.c.l.b16 %v1508
  %v1641 = vunpack.c.l.b16 %v1509
  %v1642 = vunpack.c.l.b16 %v1510
  %v1643 = vunpack.c.l.b16 %v1511
  %v1644 = vunpack.c.l.b16 %v1512
  %v1645 = vunpack.c.l.b16 %v1513
  %v1646 = vunpack.c.l.b16 %v1514
  %v1647 = vunpack.c.l.b16 %v1515
  %v1648 = vunpack.c.l.b16 %v1516
  %v1649 = vunpack.c.l.b16 %v1517
  %v1650 = vunpack.c.l.b16 %v1518
  %v1651 = vunpack.c.l.b16 %v1519
  %v1652 = vunpack.c.l.b16 %v1520
  %v1653 = vunpack.c.l.b16 %v1521
  %v1654 = vunpack.c.l.b16 %v1522
  %v1655 = vunpack.c.l.b16 %v1523
  %v1656 = vunpack.c.l.b16 %v1524
  %v1657 = vunpack.c.l.b16 %v1525
  %v1658 = vunpack.c.l.b16 %v1526
  %v1659 = vunpack.c.l.b16 %v1527
  %v1660 = vunpack.c.l.b16 %v1528
  %v1661 = vunpack.c.l.b16 %v1529
  %v1662 = vunpack.c.l.b16 %v1530
  %v1663 = vunpack.c.l.b16 %v1531
  %v1664 = vunpack.c.l.b16 %v1532
  %v1665 = vunpack.c.l.b16 %v1533
  %v1666 = vunpack.c.l.b16 %v1534
  %v1667 = vunpack.c.l.b16 %v1535
  %v1668 = vunpack.c.l.b16 %v1536
  %v1669 = vunpack.c.l.b16 %v1537
  %v1670 = vunpack.c.l.b16 %v1538
  %v1671 = vunpack.c.l.b16 %v1539
  %v1672 = vunpack.c.l.b16 %v1540
  %v1673 = vunpack.c.l.b16 %v1541
  %v1674 = vunpack.c.l.b16 %v1542
  %v1675 = vunpack.c.l.b16 %v1543
  %v1676 = vunpack.c.l.b16 %v1544
  %v1677 = vunpack.c.l.b16 %v1545
  %v1678 = vunpack.c.l.b16 %v1546
  %v1679 = vunpack.c.l.b16 %v1547
  %v1680 = vunpack.c.l.b16 %v1548
  %v1681 = vunpack.c.l.b16 %v1549
  %v1682 = vunpack.c.l.b16 %v1550
  %v1683 = vunpack.c.l.b16 %v1551
  %v1684 = vunpack.c.l.b16 %v1552
  %v1685 = vpack.c.b16 %v1622, %v1621
  %v1686 = vpack.c.b16 %v1624, %v1623
  %v1687 = vpack.c.b16 %v1626, %v1625
  %v1688 = vpack.c.b16 %v1628, %v1627
  %v1689 = vpack.c.b16 %v1630, %v1629
  %v1690 = vpack.c.b16 %v1632, %v1631
  %v1691 = vpack.c.b16 %v1634, %v1633
  %v1692 = vpack.c.b16 %v1636, %v1635
  %v1693 = vpack.c.b16 %v1638, %v1637
  %v1694 = vpack.c.b16 %v1640, %v1639
  %v1695 = vpack.c.b16 %v1642, %v1641
  %v1696 = vpack.c.b16 %v1644, %v1643
  %v1697 = vpack.c.b16 %v1646, %v1645
  %v1698 = vpack.c.b16 %v1648, %v1647
  %v1699 = vpack.c.b16 %v1650, %v1649
  %v1700 = vpack.c.b16 %v1652, %v1651
  %v1701 = vpack.c.b16 %v1654, %v1653
  %v1702 = vpack.c.b16 %v1656, %v1655
  %v1703 = vpack.c.b16 %v1658, %v1657
  %v1704 = vpack.c.b16 %v1660, %v1659
  %v1705 = vpack.c.b16 %v1662, %v1661
  %v1706 = vpack.c.b16 %v1664, %v1663
  %v1707 = vpack.c.b16 %v1666, %v1665
  %v1708 = vpack.c.b16 %v1668, %v1667
  %v1709 = vpack.c.b16 %v1670, %v1669
  %v1710 = vpack.c.b16 %v1672, %v1671
  %v1711 = vpack.c.b16 %v1674, %v1673
  %v1712 = vpack.c.b16 %v1676, %v1675
  %v1713 = vpack.c.b16 %v1678, %v1677
  %v1714 = vpack.c.b16 %v1680, %v1679
  %v1715 = vpack.c.b16 %v1682, %v1681
  %v1716 = vpack.c.b16 %v1684, %v1683
  %1749 = vmatprep.subr.bf16.mxu0 0
  %1750 = vmatpush1.bf16.msra.mxu0 %v1685
  %1751 = vmatprep.subr.bf16.mxu0 0
  %1752 = vmatpush1.bf16.msra.mxu0 %v1686
  %1753 = vmatprep.subr.bf16.mxu0 0
  %1754 = vmatpush1.bf16.msra.mxu0 %v1687
  %1755 = vmatprep.subr.bf16.mxu0 0
  %1756 = vmatpush1.bf16.msra.mxu0 %v1688
  %1757 = vmatprep.subr.bf16.mxu0 0
  %1758 = vmatpush1.bf16.msra.mxu0 %v1689
  %1759 = vmatprep.subr.bf16.mxu0 0
  %1760 = vmatpush1.bf16.msra.mxu0 %v1690
  %1761 = vmatprep.subr.bf16.mxu0 0
  %1762 = vmatpush1.bf16.msra.mxu0 %v1691
  %1763 = vmatprep.subr.bf16.mxu0 0
  %1764 = vmatpush1.bf16.msra.mxu0 %v1692
  %1765 = vmatprep.subr.bf16.mxu0 0
  %1766 = vmatpush1.bf16.msra.mxu0 %v1693
  %1767 = vmatprep.subr.bf16.mxu0 0
  %1768 = vmatpush1.bf16.msra.mxu0 %v1694
  %1769 = vmatprep.subr.bf16.mxu0 0
  %1770 = vmatpush1.bf16.msra.mxu0 %v1695
  %1771 = vmatprep.subr.bf16.mxu0 0
  %1772 = vmatpush1.bf16.msra.mxu0 %v1696
  %1773 = vmatprep.subr.bf16.mxu0 0
  %1774 = vmatpush1.bf16.msra.mxu0 %v1697
  %1775 = vmatprep.subr.bf16.mxu0 0
  %1776 = vmatpush1.bf16.msra.mxu0 %v1698
  %1777 = vmatprep.subr.bf16.mxu0 0
  %1778 = vmatpush1.bf16.msra.mxu0 %v1699
  %1779 = vmatprep.subr.bf16.mxu0 0
  %1780 = vmatpush1.bf16.msra.mxu0 %v1700
  %1781 = vmatprep.mubr.bf16.mxu0 %v1486
  %1782 = vmatmul.mubr.bf16.gmra.mrb[0].mxu0 %v1485
  %v1783 = vpop.f32.mrb[0].mxu0
  %v1784 = vadd.f32 %v1556, %v1783
  %v1785 = vpop.f32.mrb[0].mxu0
  %v1786 = vpop.f32.mrb[0].mxu0
  %v1787 = vpop.f32.mrb[0].mxu0
  %1788 = vdwg.mxu0
  %1789 = vmatprep.subr.bf16.mxu0 0
  %1790 = vmatpush1.bf16.msra.mxu0 %v1701
  %1791 = vmatprep.subr.bf16.mxu0 0
  %1792 = vmatpush1.bf16.msra.mxu0 %v1702
  %1793 = vmatprep.subr.bf16.mxu0 0
  %1794 = vmatpush1.bf16.msra.mxu0 %v1703
  %1795 = vmatprep.subr.bf16.mxu0 0
  %1796 = vmatpush1.bf16.msra.mxu0 %v1704
  %1797 = vmatprep.subr.bf16.mxu0 0
  %1798 = vmatpush1.bf16.msra.mxu0 %v1705
  %1799 = vmatprep.subr.bf16.mxu0 0
  %1800 = vmatpush1.bf16.msra.mxu0 %v1706
  %1801 = vmatprep.subr.bf16.mxu0 0
  %1802 = vmatpush1.bf16.msra.mxu0 %v1707
  %1803 = vmatprep.subr.bf16.mxu0 0
  %1804 = vmatpush1.bf16.msra.mxu0 %v1708
  %1805 = vmatprep.subr.bf16.mxu0 0
  %1806 = vmatpush1.bf16.msra.mxu0 %v1709
  %1807 = vmatprep.subr.bf16.mxu0 0
  %1808 = vmatpush1.bf16.msra.mxu0 %v1710
  %1809 = vmatprep.subr.bf16.mxu0 0
  %1810 = vmatpush1.bf16.msra.mxu0 %v1711
  %1811 = vmatprep.subr.bf16.mxu0 0
  %1812 = vmatpush1.bf16.msra.mxu0 %v1712
  %1813 = vmatprep.subr.bf16.mxu0 0
  %1814 = vmatpush1.bf16.msra.mxu0 %v1713
  %1815 = vmatprep.subr.bf16.mxu0 0
  %1816 = vmatpush1.bf16.msra.mxu0 %v1714
  %1817 = vmatprep.subr.bf16.mxu0 0
  %1818 = vmatpush1.bf16.msra.mxu0 %v1715
  %1819 = vmatprep.subr.bf16.mxu0 0
  %1820 = vmatpush1.bf16.msra.mxu0 %v1716
  %1821 = vmatprep.mubr.bf16.mxu0 %v1488
  %1822 = vmatmul.mubr.bf16.gmra.mrb[0].mxu0 %v1487
  %v1823 = vpop.f32.mrb[0].mxu0
  %v1824 = vadd.f32 %v1784, %v1823
  %v1825 = vpop.f32.mrb[0].mxu0
  %v1826 = vpop.f32.mrb[0].mxu0
  %v1827 = vpop.f32.mrb[0].mxu0
  %1828 = vdwg.mxu0
  %v1829 = vtanh.pop %v1824
  %v1830 = vld [vmem:[%s2 + $0x38] sm:$0xff]
  %v1831 = vlaneseq
  %v1832 = vshrl.u32 %v1831, 7
  %v1833 = vsub.s32 4, %v1832
  %v1834 = vrot.slane %v522, %v1833
  %v1836 = vsel %vm467, %v1829, 0
  %1838 = vmatprep.subr.mxu0 0.0
  %1839 = vmatpush1.msra.mxu0 %v1830
  %1840 = vmatprep.subr.mxu0 0.0
  %1841 = vmatpush1.msra.mxu0 0.0
  %1842 = vmatprep.subr.mxu0 0.0
  %1843 = vmatpush1.msra.mxu0 0.0
  %1844 = vmatprep.subr.mxu0 0.0
  %1845 = vmatpush1.msra.mxu0 0.0
  %1846 = vmatprep.subr.mxu0 0.0
  %1847 = vmatpush1.msra.mxu0 0.0
  %1848 = vmatprep.subr.mxu0 0.0
  %1849 = vmatpush1.msra.mxu0 0.0
  %1850 = vmatprep.subr.mxu0 0.0
  %1851 = vmatpush1.msra.mxu0 0.0
  %1852 = vmatprep.subr.mxu0 0.0
  %1853 = vmatpush1.msra.mxu0 0.0
  %1854 = vmatprep.subr.mxu0 0.0
  %1855 = vmatpush1.msra.mxu0 0.0
  %1856 = vmatprep.subr.mxu0 0.0
  %1857 = vmatpush1.msra.mxu0 0.0
  %1858 = vmatprep.subr.mxu0 0.0
  %1859 = vmatpush1.msra.mxu0 0.0
  %1860 = vmatprep.subr.mxu0 0.0
  %1861 = vmatpush1.msra.mxu0 0.0
  %1862 = vmatprep.subr.mxu0 0.0
  %1863 = vmatpush1.msra.mxu0 0.0
  %1864 = vmatprep.subr.mxu0 0.0
  %1865 = vmatpush1.msra.mxu0 0.0
  %1866 = vmatprep.subr.mxu0 0.0
  %1867 = vmatpush1.msra.mxu0 0.0
  %1868 = vmatprep.subr.mxu0 0.0
  %1869 = vmatpush1.msra.mxu0 0.0
  %1870 = vmatprep.subr.mxu0 0.0
  %1871 = vmatpush1.msra.mxu0 0.0
  %1872 = vmatprep.subr.mxu0 0.0
  %1873 = vmatpush1.msra.mxu0 0.0
  %1874 = vmatprep.subr.mxu0 0.0
  %1875 = vmatpush1.msra.mxu0 0.0
  %1876 = vmatprep.subr.mxu0 0.0
  %1877 = vmatpush1.msra.mxu0 0.0
  %1878 = vmatprep.subr.mxu0 0.0
  %1879 = vmatpush1.msra.mxu0 0.0
  %1880 = vmatprep.subr.mxu0 0.0
  %1881 = vmatpush1.msra.mxu0 0.0
  %1882 = vmatprep.subr.mxu0 0.0
  %1883 = vmatpush1.msra.mxu0 0.0
  %1884 = vmatprep.subr.mxu0 0.0
  %1885 = vmatpush1.msra.mxu0 0.0
  %1886 = vmatprep.subr.mxu0 0.0
  %1887 = vmatpush1.msra.mxu0 0.0
  %1888 = vmatprep.subr.mxu0 0.0
  %1889 = vmatpush1.msra.mxu0 0.0
  %1890 = vmatprep.subr.mxu0 0.0
  %1891 = vmatpush1.msra.mxu0 0.0
  %1892 = vmatprep.subr.mxu0 0.0
  %1893 = vmatpush1.msra.mxu0 0.0
  %1894 = vmatprep.subr.mxu0 0.0
  %1895 = vmatpush1.msra.mxu0 0.0
  %1896 = vmatprep.subr.mxu0 0.0
  %1897 = vmatpush1.msra.mxu0 0.0
  %1898 = vmatprep.subr.mxu0 0.0
  %1899 = vmatpush1.msra.mxu0 0.0
  %1900 = vmatprep.subr.mxu0 0.0
  %1901 = vmatpush1.msra.mxu0 0.0
  %1902 = vmatprep.mubr.f32.mxu0 0.0
  %1903 = vmatmul.mubr.f32.gmra.mrb[0].mxu0 %v1836
  %v1904 = vpop.f32.mrb[0].mxu0
  %v1905 = vadd.f32 %v1834, %v1904
  %v1906 = vpop.f32.mrb[0].mxu0
  %1907 = vdwg.mxu0
  %vm1908 = vcmask 130048
  %1909 = vst.msk [vmem:[%s5] sm:$0xff] %vm1908, %v1905
  %v1910 = vld [vmem:[%s1] sm:$0xff]
  %v1911 = vlaneseq
  %v1912 = vshrl.u32 %v1911, 7
  %v1913 = vsub.s32 5, %v1912
  %v1914 = vrot.slane %v522, %v1913
  %v1915 = vmul.f32 %v1914, %v1910
  %v1916 = vadd.f32 %v1905, %v1915
  %1918 = vrot.lane.b32.xlu0 %v1916, 16
  %v1919 = vpop.permute.xlu0 %1918
  %vm1921 = vcmask 261248
  %1922 = vst.msk [vmem:[%s5] sm:$0xff] %vm1921, %v1919
  // Predicated region
  $region22: #{generator_forward.1} parent=0 // pred_check
    _
  $region23: #{generator_forward.1} parent=0 // pred_check_branch
    %1924 = sbr.rel (0) target = $region25
  $region24: #{generator_forward.1} parent=0 // pred_region
    _
  $region25: #{generator_forward.1} parent=0 // pred_fallthru
    _
  // Predicated region
  $region26: #{generator_forward.1} parent=0 // pred_check
    _
  $region27: #{generator_forward.1} parent=0 // pred_check_branch
    %1926 = sbr.rel (0) target = $region29
  $region28: #{generator_forward.1} parent=0 // pred_region
    _
  $region29: #{generator_forward.1} parent=0 // pred_fallthru
    _

</llo_original>
